<compile_context>
chip_gen: v7x
topology: tpu7x:2x2x1
jax: 0.10.0
libtpu: 0.0.40
codegen_flags: <defaults>
</compile_context>

<pallas_src>
import jax
import jax.numpy as jnp
from jax.experimental import pallas as pl
from jax.experimental.pallas import tpu as pltpu


def _round_up(x, m):
    return ((x + m - 1) // m) * m


def mlp_resnet_kernel(x_ref, wc_ref, bh_ref, wres_ref, w5_ref, b5_ref, o_ref):
    bh = bh_ref[...]                                   # (4, P*H), resident biases

    # fused fc_feature + fc1 (block-diagonal, lane-dense):
    #   (TB/P, P*N*F) @ (P*N*F, P*H) on the MXU, f32 accumulate.
    h = jnp.dot(x_ref[...], wc_ref[...], preferred_element_type=jnp.float32)
    h = jnp.maximum(h + bh[0:1, :], 0.0)

    # residual blocks 2..4 (block-diagonal weights keep the P packed rows independent)
    h = jnp.maximum(
        h + jnp.dot(h, wres_ref[0], preferred_element_type=jnp.float32) + bh[1:2, :], 0.0)
    h = jnp.maximum(
        h + jnp.dot(h, wres_ref[1], preferred_element_type=jnp.float32) + bh[2:3, :], 0.0)
    h = jnp.maximum(
        h + jnp.dot(h, wres_ref[2], preferred_element_type=jnp.float32) + bh[3:4, :], 0.0)

    # fc5 (block-diagonal): (TB/P, P*H) @ (P*H, P) + b5
    o_ref[...] = jnp.dot(h, w5_ref[...], preferred_element_type=jnp.float32) + b5_ref[...]


def mlp_resnet_forward(x, params, tb_max=4096):
    B, N, F = x.shape
    H = params["w1"].shape[1]

    if x.dtype not in (jnp.float32, jnp.bfloat16):
        # TODO(synk): prefer upstream producing f32/bf16 to avoid this extra HBM pass.
        x = x.astype(jnp.float32)

    # --- fold fc_feature into fc1 (no activation between them; dropout = identity) ----
    wf = params["wf"].reshape(-1)                                       # (F,)
    w_comb = (params["w1"][:, None, :] * wf[None, :, None]).reshape(N * F, H)
    b_comb = (params["bf"].reshape(()) * jnp.sum(params["w1"], axis=0, keepdims=True)
              + params["b1"])                                           # (1, H)

    # --- lane-packing: P batch rows per sublane row so hidden state is 128 lanes wide --
    P = (128 // H) if (H < 128 and 128 % H == 0) else 1
    P = max(1, min(P, 32))
    PH = P * H
    KD = P * N * F

    eyeP = jnp.eye(P, dtype=jnp.float32)
    wc_blk = jnp.kron(eyeP, w_comb).astype(x.dtype)                     # (P*N*F, P*H)
    wres = jnp.stack([jnp.kron(eyeP, params[k])
                      for k in ("w2", "w3", "w4")]).astype(jnp.float32)  # (3, P*H, P*H)
    bh = jnp.concatenate(
        [jnp.tile(b, (1, P)) for b in (b_comb, params["b2"], params["b3"], params["b4"])],
        axis=0).astype(jnp.float32)                                      # (4, P*H)
    w5_blk = jnp.kron(eyeP, params["w5"]).astype(jnp.float32)            # (P*H, P)
    b5_blk = jnp.tile(params["b5"], (1, P)).astype(jnp.float32)          # (1, P)

    # --- batch padding: only to the small 256-row quantum (never to a full tile) -------
    quantum = 256
    tb_max = min(max(_round_up(int(tb_max), quantum), quantum), 8192)
    B_pad = _round_up(B, quantum)
    x_flat = x.reshape(B, N * F)
    if B_pad != B:
        x_flat = jnp.pad(x_flat, ((0, B_pad - B), (0, 0)))
    x_packed = x_flat.reshape(B_pad // P, KD)          # contiguous reshape: free in HBM

    # --- tile size: largest 256-multiple dividing B_pad, <= tb_max; prefer >=2 steps ---
    m = B_pad // quantum
    k_max = min(tb_max // quantum, m)
    k = max(d for d in range(1, k_max + 1) if m % d == 0)
    if m >= 2 and k == m:                              # give both v7x TCs work
        k = max(d for d in range(1, m // 2 + 1) if m % d == 0)
    TB = k * quantum
    TBP = TB // P                                      # multiple of 8 by construction
    grid = (m // k,)

    # --- explicit VMEM budget (double-buffered x tile dominates) -----------------------
    itemsize = jnp.dtype(x.dtype).itemsize
    const_bytes = sum(int(a.size) * jnp.dtype(a.dtype).itemsize
                      for a in (wc_blk, bh, wres, w5_blk, b5_blk))
    need = 2 * TB * N * F * itemsize + 2 * TBP * P * 4 + 2 * const_bytes
    vmem_limit = int(min(max(need + (4 << 20), 32 << 20), 48 << 20))

    const2 = lambda i: (0, 0)
    out = pl.pallas_call(
        mlp_resnet_kernel,
        out_shape=jax.ShapeDtypeStruct((B_pad // P, P), jnp.float32),
        grid=grid,
        in_specs=[
            pl.BlockSpec((TBP, KD), lambda i: (i, 0)),        # x tile (pipelined)
            pl.BlockSpec((KD, PH), const2),                   # W_comb (block-diag), resident
            pl.BlockSpec((4, PH), const2),                    # biases b_comb,b2,b3,b4
            pl.BlockSpec((3, PH, PH), lambda i: (0, 0, 0)),   # w2/w3/w4 (block-diag)
            pl.BlockSpec((PH, P), const2),                    # w5 (block-diag)
            pl.BlockSpec((1, P), const2),                     # b5
        ],
        out_specs=pl.BlockSpec((TBP, P), lambda i: (i, 0)),
        compiler_params=pltpu.CompilerParams(
            dimension_semantics=("parallel",),
            vmem_limit_bytes=vmem_limit,
        ),
    )(x_packed, wc_blk, bh, wres, w5_blk, b5_blk)

    # (r, j) of the packed output is batch row P*r + j -> row-major flatten restores order
    return out.reshape(B_pad)[:B]


def init_params(key, n_input=64, n_feature=4, hidden_dim=32, output_dim=1):
    """Deterministic synthetic parameters. Weights stored as (in, out)."""
    ks = jax.random.split(key, 12)

    def lin(kw, kb, fan_in, fan_out):
        bound = 1.0 / jnp.sqrt(fan_in)
        w = jax.random.uniform(kw, (fan_in, fan_out), jnp.float32, -bound, bound)
        b = jax.random.uniform(kb, (1, fan_out), jnp.float32, -bound, bound)
        return w, b

    wf, bf = lin(ks[0], ks[1], n_feature, 1)        # fc_feature: (F,1), (1,1)
    w1, b1 = lin(ks[2], ks[3], n_input, hidden_dim)
    w2, b2 = lin(ks[4], ks[5], hidden_dim, hidden_dim)
    w3, b3 = lin(ks[6], ks[7], hidden_dim, hidden_dim)
    w4, b4 = lin(ks[8], ks[9], hidden_dim, hidden_dim)
    w5, b5 = lin(ks[10], ks[11], hidden_dim, output_dim)

    return {
        "wf": wf, "bf": bf,
        "w1": w1, "b1": b1,
        "w2": w2, "b2": b2,
        "w3": w3, "b3": b3,
        "w4": w4, "b4": b4,
        "w5": w5, "b5": b5,
    }


def mlp_resnet_ref(x, p):
    """Pure-JAX reference (un-folded, mirrors the PyTorch forward, eval mode)."""
    h = jnp.einsum("bnf,fo->bno", x, p["wf"])[..., 0] + p["bf"][0, 0]   # (B, N)
    h = jnp.maximum(h @ p["w1"] + p["b1"], 0.0)
    h = jnp.maximum(h + (h @ p["w2"] + p["b2"]), 0.0)
    h = jnp.maximum(h + (h @ p["w3"] + p["b3"]), 0.0)
    h = jnp.maximum(h + (h @ p["w4"] + p["b4"]), 0.0)
    return (h @ p["w5"] + p["b5"])[:, 0]


if __name__ == "__main__":
    n_input, n_feature, hidden_dim, output_dim = 64, 4, 32, 1

    key = jax.random.PRNGKey(0)
    kx1, kx2, kp = jax.random.split(key, 3)
    params = init_params(kp, n_input, n_feature, hidden_dim, output_dim)

    # Case 1: small batch (grid = 1, tile padded up to the 256-row quantum).
    B1 = 8
    x1 = jax.random.normal(kx1, (B1, n_input, n_feature), jnp.float32)
    out1 = jax.block_until_ready(mlp_resnet_forward(x1, params))
    ref1 = mlp_resnet_ref(x1, params)
    assert out1.shape == (B1,)
    assert jnp.allclose(out1, ref1, atol=1e-4, rtol=1e-4), "case 1 mismatch vs JAX reference"

    # Case 2: multi-step grid with ragged batch (B not a multiple of TB, B_pad > TB).
    B2 = 1000
    x2 = jax.random.normal(kx2, (B2, n_input, n_feature), jnp.float32)
    out2 = jax.block_until_ready(mlp_resnet_forward(x2, params, tb_max=512))
    ref2 = mlp_resnet_ref(x2, params)
    assert out2.shape == (B2,)
    assert jnp.allclose(out2, ref2, atol=1e-4, rtol=1e-4), "case 2 mismatch vs JAX reference"

    print("KERNEL_OK")
</pallas_src>

<mosaic_0001>
module attributes {stable_mosaic.version = 11 : i64} {
  func.func @mlp_resnet_kernel(%arg0: i32, %arg1: memref<64x1024xf32, #tpu.memory_space<vmem>>, %arg2: memref<1024x128xf32, #tpu.memory_space<vmem>>, %arg3: memref<4x128xf32, #tpu.memory_space<vmem>>, %arg4: memref<3x128x128xf32, #tpu.memory_space<vmem>>, %arg5: memref<128x4xf32, #tpu.memory_space<vmem>>, %arg6: memref<1x4xf32, #tpu.memory_space<vmem>>, %arg7: memref<64x4xf32, #tpu.memory_space<vmem>>) attributes {dimension_semantics = [#tpu.dimension_semantics<parallel>], iteration_bounds = array<i64: 1>, scalar_prefetch = 0 : i64, scratch_operands = 0 : i64, tpu.core_type = #tpu.core_type<tc>, window_params = [{transform_indices = @transform_0, window_bounds = array<i64: 64, 1024>}, {pipeline_mode = #tpu.pipeline_mode<synchronous>, transform_indices = @transform_1, window_bounds = array<i64: 1024, 128>}, {pipeline_mode = #tpu.pipeline_mode<synchronous>, transform_indices = @transform_2, window_bounds = array<i64: 4, 128>}, {pipeline_mode = #tpu.pipeline_mode<synchronous>, transform_indices = @transform_3, window_bounds = array<i64: 3, 128, 128>}, {pipeline_mode = #tpu.pipeline_mode<synchronous>, transform_indices = @transform_4, window_bounds = array<i64: 128, 4>}, {pipeline_mode = #tpu.pipeline_mode<synchronous>, transform_indices = @transform_5, window_bounds = array<i64: 1, 4>}, {transform_indices = @transform_6, window_bounds = array<i64: 64, 4>}]} {
    %c0 = arith.constant 0 : index
    %c0_0 = arith.constant 0 : index
    %0 = vector.load %arg3[%c0, %c0_0] : memref<4x128xf32, #tpu.memory_space<vmem>>, vector<4x128xf32>
    %c0_1 = arith.constant 0 : index
    %c0_2 = arith.constant 0 : index
    %1 = vector.load %arg1[%c0_1, %c0_2] : memref<64x1024xf32, #tpu.memory_space<vmem>>, vector<64x1024xf32>
    %c0_3 = arith.constant 0 : index
    %c0_4 = arith.constant 0 : index
    %2 = vector.load %arg2[%c0_3, %c0_4] : memref<1024x128xf32, #tpu.memory_space<vmem>>, vector<1024x128xf32>
    %cst = arith.constant dense<0.000000e+00> : vector<64x128xf32>
    %3 = tpu.matmul %1, %2, %cst {dimension_numbers = #tpu.dot_dimension_numbers<[1], [0], [0], [1], [0, 0, 1, 1], [], []>} : vector<64x1024xf32>, vector<1024x128xf32>, vector<64x128xf32> -> vector<64x128xf32>
    %4 = vector.extract_strided_slice %0 {offsets = [0, 0], sizes = [1, 128], strides = [1, 1]} : vector<4x128xf32> to vector<1x128xf32>
    %5 = vector.broadcast %4 : vector<1x128xf32> to vector<64x128xf32>
    %6 = arith.addf %3, %5 : vector<64x128xf32>
    %cst_5 = arith.constant 0.000000e+00 : f32
    %7 = vector.broadcast %cst_5 : f32 to vector<64x128xf32>
    %8 = arith.maximumf %6, %7 : vector<64x128xf32>
    %c0_6 = arith.constant 0 : index
    %c0_7 = arith.constant 0 : index
    %c0_8 = arith.constant 0 : index
    %9 = vector.load %arg4[%c0_6, %c0_7, %c0_8] : memref<3x128x128xf32, #tpu.memory_space<vmem>>, vector<1x128x128xf32>
    %10 = vector.shape_cast %9 : vector<1x128x128xf32> to vector<128x128xf32>
    %cst_9 = arith.constant dense<0.000000e+00> : vector<64x128xf32>
    %11 = tpu.matmul %8, %10, %cst_9 {dimension_numbers = #tpu.dot_dimension_numbers<[1], [0], [0], [1], [0, 0, 1, 1], [], []>} : vector<64x128xf32>, vector<128x128xf32>, vector<64x128xf32> -> vector<64x128xf32>
    %12 = arith.addf %8, %11 : vector<64x128xf32>
    %13 = vector.extract_strided_slice %0 {offsets = [1, 0], sizes = [1, 128], strides = [1, 1]} : vector<4x128xf32> to vector<1x128xf32>
    %14 = vector.broadcast %13 : vector<1x128xf32> to vector<64x128xf32>
    %15 = arith.addf %12, %14 : vector<64x128xf32>
    %cst_10 = arith.constant 0.000000e+00 : f32
    %16 = vector.broadcast %cst_10 : f32 to vector<64x128xf32>
    %17 = arith.maximumf %15, %16 : vector<64x128xf32>
    %c1 = arith.constant 1 : index
    %c0_11 = arith.constant 0 : index
    %c0_12 = arith.constant 0 : index
    %18 = vector.load %arg4[%c1, %c0_11, %c0_12] : memref<3x128x128xf32, #tpu.memory_space<vmem>>, vector<1x128x128xf32>
    %19 = vector.shape_cast %18 : vector<1x128x128xf32> to vector<128x128xf32>
    %cst_13 = arith.constant dense<0.000000e+00> : vector<64x128xf32>
    %20 = tpu.matmul %17, %19, %cst_13 {dimension_numbers = #tpu.dot_dimension_numbers<[1], [0], [0], [1], [0, 0, 1, 1], [], []>} : vector<64x128xf32>, vector<128x128xf32>, vector<64x128xf32> -> vector<64x128xf32>
    %21 = arith.addf %17, %20 : vector<64x128xf32>
    %22 = vector.extract_strided_slice %0 {offsets = [2, 0], sizes = [1, 128], strides = [1, 1]} : vector<4x128xf32> to vector<1x128xf32>
    %23 = vector.broadcast %22 : vector<1x128xf32> to vector<64x128xf32>
    %24 = arith.addf %21, %23 : vector<64x128xf32>
    %cst_14 = arith.constant 0.000000e+00 : f32
    %25 = vector.broadcast %cst_14 : f32 to vector<64x128xf32>
    %26 = arith.maximumf %24, %25 : vector<64x128xf32>
    %c2 = arith.constant 2 : index
    %c0_15 = arith.constant 0 : index
    %c0_16 = arith.constant 0 : index
    %27 = vector.load %arg4[%c2, %c0_15, %c0_16] : memref<3x128x128xf32, #tpu.memory_space<vmem>>, vector<1x128x128xf32>
    %28 = vector.shape_cast %27 : vector<1x128x128xf32> to vector<128x128xf32>
    %cst_17 = arith.constant dense<0.000000e+00> : vector<64x128xf32>
    %29 = tpu.matmul %26, %28, %cst_17 {dimension_numbers = #tpu.dot_dimension_numbers<[1], [0], [0], [1], [0, 0, 1, 1], [], []>} : vector<64x128xf32>, vector<128x128xf32>, vector<64x128xf32> -> vector<64x128xf32>
    %30 = arith.addf %26, %29 : vector<64x128xf32>
    %31 = vector.extract_strided_slice %0 {offsets = [3, 0], sizes = [1, 128], strides = [1, 1]} : vector<4x128xf32> to vector<1x128xf32>
    %32 = vector.broadcast %31 : vector<1x128xf32> to vector<64x128xf32>
    %33 = arith.addf %30, %32 : vector<64x128xf32>
    %cst_18 = arith.constant 0.000000e+00 : f32
    %34 = vector.broadcast %cst_18 : f32 to vector<64x128xf32>
    %35 = arith.maximumf %33, %34 : vector<64x128xf32>
    %c0_19 = arith.constant 0 : index
    %c0_20 = arith.constant 0 : index
    %36 = vector.load %arg5[%c0_19, %c0_20] : memref<128x4xf32, #tpu.memory_space<vmem>>, vector<128x4xf32>
    %cst_21 = arith.constant dense<0.000000e+00> : vector<64x4xf32>
    %37 = tpu.matmul %35, %36, %cst_21 {dimension_numbers = #tpu.dot_dimension_numbers<[1], [0], [0], [1], [0, 0, 1, 1], [], []>} : vector<64x128xf32>, vector<128x4xf32>, vector<64x4xf32> -> vector<64x4xf32>
    %c0_22 = arith.constant 0 : index
    %c0_23 = arith.constant 0 : index
    %38 = vector.load %arg6[%c0_22, %c0_23] : memref<1x4xf32, #tpu.memory_space<vmem>>, vector<1x4xf32>
    %39 = vector.broadcast %38 : vector<1x4xf32> to vector<64x4xf32>
    %40 = arith.addf %37, %39 : vector<64x4xf32>
    %c0_24 = arith.constant 0 : index
    %c0_25 = arith.constant 0 : index
    %41 = vector.load %arg7[%c0_24, %c0_25] : memref<64x4xf32, #tpu.memory_space<vmem>>, vector<64x4xf32>
    tpu.vector_store %arg7[%c0_24, %c0_25], %40 {strides = array<i32>} : memref<64x4xf32, #tpu.memory_space<vmem>>, vector<64x4xf32>,
    return
  }
  func.func @transform_0(%arg0: i32) -> (i32, i32) {
    %c0_i32 = arith.constant 0 : i32
    %c0_i32_0 = arith.constant 0 : i32
    return %arg0, %c0_i32 : i32, i32
  }
  func.func @transform_1(%arg0: i32) -> (i32, i32) {
    %c0_i32 = arith.constant 0 : i32
    %c0_i32_0 = arith.constant 0 : i32
    %c0_i32_1 = arith.constant 0 : i32
    return %c0_i32, %c0_i32_0 : i32, i32
  }
  func.func @transform_2(%arg0: i32) -> (i32, i32) {
    %c0_i32 = arith.constant 0 : i32
    %c0_i32_0 = arith.constant 0 : i32
    %c0_i32_1 = arith.constant 0 : i32
    return %c0_i32, %c0_i32_0 : i32, i32
  }
  func.func @transform_3(%arg0: i32) -> (i32, i32, i32) {
    %c0_i32 = arith.constant 0 : i32
    %c0_i32_0 = arith.constant 0 : i32
    %c0_i32_1 = arith.constant 0 : i32
    %c0_i32_2 = arith.constant 0 : i32
    return %c0_i32, %c0_i32_0, %c0_i32_1 : i32, i32, i32
  }
  func.func @transform_4(%arg0: i32) -> (i32, i32) {
    %c0_i32 = arith.constant 0 : i32
    %c0_i32_0 = arith.constant 0 : i32
    %c0_i32_1 = arith.constant 0 : i32
    return %c0_i32, %c0_i32_0 : i32, i32
  }
  func.func @transform_5(%arg0: i32) -> (i32, i32) {
    %c0_i32 = arith.constant 0 : i32
    %c0_i32_0 = arith.constant 0 : i32
    %c0_i32_1 = arith.constant 0 : i32
    return %c0_i32, %c0_i32_0 : i32, i32
  }
  func.func @transform_6(%arg0: i32) -> (i32, i32) {
    %c0_i32 = arith.constant 0 : i32
    %c0_i32_0 = arith.constant 0 : i32
    return %arg0, %c0_i32 : i32, i32
  }
}

</mosaic_0001>

<llo_original>
// kernel: tpu_custom_call.1
$region0: #{tpu_custom_call.1}
  #allocation0 [shape = 'u32[]', space=smem, size = 0x4, offset = 0x4, fixed_abs, tag = 'smem constant byte address 0x4 - core index']
  #allocation1 [shape = 'u32[144,128]{1,0:T(1,128)}', space=vmem, size = 0x12000, scoped, tag = 'internal scratch']
  %s0 = inlined_call_operand.hbm [shape: f32[64,1024], index: 0, kind: input, shape index: {}]
  %s1 = inlined_call_operand.hbm [shape: f32[1024,128], index: 1, kind: input, shape index: {}]
  %s2 = inlined_call_operand.vmem [shape: f32[4,128], index: 2, kind: input, shape index: {}]
  %s3 = inlined_call_operand.hbm [shape: f32[3,128,128], index: 3, kind: input, shape index: {}]
  %s4 = inlined_call_operand.vmem [shape: f32[128,4], index: 4, kind: input, shape index: {}]
  %s5 = inlined_call_operand.vmem [shape: f32[1,4], index: 5, kind: input, shape index: {}]
  %s6 = inlined_call_operand.vmem [shape: f32[64,4], index: 6, kind: output, shape index: {}]
  %s7 = sld [smem:[#allocation0]]
  $region46: #{tpu_custom_call.1} parent=0
    _
  %s9 = ssub.s32 1, %s7
  %s10 = scalar_select 0, %s9, %s7
  $region1: #{tpu_custom_call.1} parent=0
    #allocation2 [shape = 'u8[262144]{0}', space=vmem, size = 0x40000, scoped, tag = 'input window, operand 0, single buffered']
    #allocation3 [shape = 's32[1]{0}', space=sflag, size = 0x4, scoped, tag = 'scoped memory for tpu_custom_call.1']
    #allocation4 [shape = 'u8[524288]{0}', space=vmem, size = 0x80000, scoped, tag = 'input window, operand 1, single buffered']
    #allocation5 [shape = 's32[1]{0}', space=sflag, size = 0x4, scoped, tag = 'scoped memory for tpu_custom_call.1']
    #allocation6 [shape = 'u8[196608]{0}', space=vmem, size = 0x30000, scoped, tag = 'input window, operand 3, single buffered']
    %11 = vsyncpa [#allocation3], 0
    %12 = vsyncpa [#allocation5], 0
    // Predicated region
    $region2: #{tpu_custom_call.1} parent=1 // pred_check
      _
    $region3: #{tpu_custom_call.1} parent=1 // pred_check_branch
      %14 = sbr.rel (0) target = $region5
    $region4: #{tpu_custom_call.1} parent=1 // pred_region
      %s16 = ssub.s32 8192, 8192
      %17 = vsyncadd [#allocation3], %s16
      %s18 = sshll.u32 [#allocation2], 4
      %s19 = int_to_ptr.vmem [resolvable:$true] %s18
      %24 = dma.hbm_to_vmem [thread:$0]  %s0, 8192, %s19, [#allocation3], 1024, 1024, 64
    $region5: #{tpu_custom_call.1} parent=1 // pred_fallthru
      _
    // Predicated region
    $region6: #{tpu_custom_call.1} parent=1 // pred_check
      _
    $region7: #{tpu_custom_call.1} parent=1 // pred_check_branch
      %26 = sbr.rel (0) target = $region9
    $region8: #{tpu_custom_call.1} parent=1 // pred_region
      %s28 = ssub.s32 16384, 16384
      %29 = vsyncadd [#allocation5], %s28
      %s30 = sshll.u32 [#allocation4], 4
      %s31 = int_to_ptr.vmem [resolvable:$true] %s30
      %36 = dma.hbm_to_vmem [thread:$0]  %s1, 16384, %s31, [#allocation5], 128, 128, 8
    $region9: #{tpu_custom_call.1} parent=1 // pred_fallthru
      _
    // Predicated region
    $region10: #{tpu_custom_call.1} parent=1 // pred_check
      _
    $region11: #{tpu_custom_call.1} parent=1 // pred_check_branch
      %38 = sbr.rel (0) target = $region13
    $region12: #{tpu_custom_call.1} parent=1 // pred_region
      _
    $region13: #{tpu_custom_call.1} parent=1 // pred_fallthru
      _
    // Predicated region
    $region14: #{tpu_custom_call.1} parent=1 // pred_check
      _
    $region15: #{tpu_custom_call.1} parent=1 // pred_check_branch
      %40 = sbr.rel (0) target = $region17
    $region16: #{tpu_custom_call.1} parent=1 // pred_region
      %s42 = ssub.s32 6144, 6144
      %43 = vsyncadd [#allocation5], %s42
      %s44 = sshll.u32 [#allocation6], 4
      %s45 = int_to_ptr.vmem [resolvable:$true] %s44
      %50 = dma.hbm_to_vmem [thread:$0]  %s3, 6144, %s45, [#allocation5], 128, 128, 8
    $region17: #{tpu_custom_call.1} parent=1 // pred_fallthru
      _
    // Predicated region
    $region18: #{tpu_custom_call.1} parent=1 // pred_check
      _
    $region19: #{tpu_custom_call.1} parent=1 // pred_check_branch
      %52 = sbr.rel (0) target = $region21
    $region20: #{tpu_custom_call.1} parent=1 // pred_region
      _
    $region21: #{tpu_custom_call.1} parent=1 // pred_fallthru
      _
    // Predicated region
    $region22: #{tpu_custom_call.1} parent=1 // pred_check
      _
    $region23: #{tpu_custom_call.1} parent=1 // pred_check_branch
      %54 = sbr.rel (0) target = $region25
    $region24: #{tpu_custom_call.1} parent=1 // pred_region
      _
    $region25: #{tpu_custom_call.1} parent=1 // pred_fallthru
      _
    // Predicated region
    $region26: #{tpu_custom_call.1} parent=1 // pred_check
      _
    $region27: #{tpu_custom_call.1} parent=1 // pred_check_branch
      %56 = sbr.rel (0) target = $region29
    $region28: #{tpu_custom_call.1} parent=1 // pred_region
      %57 = dma.done [#allocation3], 8192
    $region29: #{tpu_custom_call.1} parent=1 // pred_fallthru
      _
    // Predicated region
    $region30: #{tpu_custom_call.1} parent=1 // pred_check
      _
    $region31: #{tpu_custom_call.1} parent=1 // pred_check_branch
      %59 = sbr.rel (0) target = $region33
    $region32: #{tpu_custom_call.1} parent=1 // pred_region
      %60 = dma.done [#allocation5], 16384
    $region33: #{tpu_custom_call.1} parent=1 // pred_fallthru
      _
    // Predicated region
    $region34: #{tpu_custom_call.1} parent=1 // pred_check
      _
    $region35: #{tpu_custom_call.1} parent=1 // pred_check_branch
      %62 = sbr.rel (0) target = $region37
    $region36: #{tpu_custom_call.1} parent=1 // pred_region
      %63 = dma.done [#allocation5], 6144
    $region37: #{tpu_custom_call.1} parent=1 // pred_fallthru
      _
    %v64 = vld [vmem:[%s2] sm:$0xf]
    %v65 = vld [vmem:[#allocation2] sm:$0xff]
    %v66 = vld [vmem:[#allocation2 + $0x8] sm:$0xff]
    %v67 = vld [vmem:[#allocation2 + $0x10] sm:$0xff]
    %v68 = vld [vmem:[#allocation2 + $0x18] sm:$0xff]
    %v69 = vld [vmem:[#allocation2 + $0x20] sm:$0xff]
    %v70 = vld [vmem:[#allocation2 + $0x28] sm:$0xff]
    %v71 = vld [vmem:[#allocation2 + $0x30] sm:$0xff]
    %v72 = vld [vmem:[#allocation2 + $0x38] sm:$0xff]
    %v73 = vld [vmem:[#allocation2 + $0x40] sm:$0xff]
    %v74 = vld [vmem:[#allocation2 + $0x48] sm:$0xff]
    %v75 = vld [vmem:[#allocation2 + $0x50] sm:$0xff]
    %v76 = vld [vmem:[#allocation2 + $0x58] sm:$0xff]
    %v77 = vld [vmem:[#allocation2 + $0x60] sm:$0xff]
    %v78 = vld [vmem:[#allocation2 + $0x68] sm:$0xff]
    %v79 = vld [vmem:[#allocation2 + $0x70] sm:$0xff]
    %v80 = vld [vmem:[#allocation2 + $0x78] sm:$0xff]
    %v81 = vld [vmem:[#allocation2 + $0x80] sm:$0xff]
    %v82 = vld [vmem:[#allocation2 + $0x88] sm:$0xff]
    %v83 = vld [vmem:[#allocation2 + $0x90] sm:$0xff]
    %v84 = vld [vmem:[#allocation2 + $0x98] sm:$0xff]
    %v85 = vld [vmem:[#allocation2 + $0xa0] sm:$0xff]
    %v86 = vld [vmem:[#allocation2 + $0xa8] sm:$0xff]
    %v87 = vld [vmem:[#allocation2 + $0xb0] sm:$0xff]
    %v88 = vld [vmem:[#allocation2 + $0xb8] sm:$0xff]
    %v89 = vld [vmem:[#allocation2 + $0xc0] sm:$0xff]
    %v90 = vld [vmem:[#allocation2 + $0xc8] sm:$0xff]
    %v91 = vld [vmem:[#allocation2 + $0xd0] sm:$0xff]
    %v92 = vld [vmem:[#allocation2 + $0xd8] sm:$0xff]
    %v93 = vld [vmem:[#allocation2 + $0xe0] sm:$0xff]
    %v94 = vld [vmem:[#allocation2 + $0xe8] sm:$0xff]
    %v95 = vld [vmem:[#allocation2 + $0xf0] sm:$0xff]
    %v96 = vld [vmem:[#allocation2 + $0xf8] sm:$0xff]
    %v97 = vld [vmem:[#allocation2 + $0x100] sm:$0xff]
    %v98 = vld [vmem:[#allocation2 + $0x108] sm:$0xff]
    %v99 = vld [vmem:[#allocation2 + $0x110] sm:$0xff]
    %v100 = vld [vmem:[#allocation2 + $0x118] sm:$0xff]
    %v101 = vld [vmem:[#allocation2 + $0x120] sm:$0xff]
    %v102 = vld [vmem:[#allocation2 + $0x128] sm:$0xff]
    %v103 = vld [vmem:[#allocation2 + $0x130] sm:$0xff]
    %v104 = vld [vmem:[#allocation2 + $0x138] sm:$0xff]
    %v105 = vld [vmem:[#allocation2 + $0x140] sm:$0xff]
    %v106 = vld [vmem:[#allocation2 + $0x148] sm:$0xff]
    %v107 = vld [vmem:[#allocation2 + $0x150] sm:$0xff]
    %v108 = vld [vmem:[#allocation2 + $0x158] sm:$0xff]
    %v109 = vld [vmem:[#allocation2 + $0x160] sm:$0xff]
    %v110 = vld [vmem:[#allocation2 + $0x168] sm:$0xff]
    %v111 = vld [vmem:[#allocation2 + $0x170] sm:$0xff]
    %v112 = vld [vmem:[#allocation2 + $0x178] sm:$0xff]
    %v113 = vld [vmem:[#allocation2 + $0x180] sm:$0xff]
    %v114 = vld [vmem:[#allocation2 + $0x188] sm:$0xff]
    %v115 = vld [vmem:[#allocation2 + $0x190] sm:$0xff]
    %v116 = vld [vmem:[#allocation2 + $0x198] sm:$0xff]
    %v117 = vld [vmem:[#allocation2 + $0x1a0] sm:$0xff]
    %v118 = vld [vmem:[#allocation2 + $0x1a8] sm:$0xff]
    %v119 = vld [vmem:[#allocation2 + $0x1b0] sm:$0xff]
    %v120 = vld [vmem:[#allocation2 + $0x1b8] sm:$0xff]
    %v121 = vld [vmem:[#allocation2 + $0x1c0] sm:$0xff]
    %v122 = vld [vmem:[#allocation2 + $0x1c8] sm:$0xff]
    %v123 = vld [vmem:[#allocation2 + $0x1d0] sm:$0xff]
    %v124 = vld [vmem:[#allocation2 + $0x1d8] sm:$0xff]
    %v125 = vld [vmem:[#allocation2 + $0x1e0] sm:$0xff]
    %v126 = vld [vmem:[#allocation2 + $0x1e8] sm:$0xff]
    %v127 = vld [vmem:[#allocation2 + $0x1f0] sm:$0xff]
    %v128 = vld [vmem:[#allocation2 + $0x1f8] sm:$0xff]
    %v129 = vld [vmem:[#allocation4] sm:$0xff]
    %v130 = vld [vmem:[#allocation4 + $0x8] sm:$0xff]
    %v131 = vld [vmem:[#allocation4 + $0x10] sm:$0xff]
    %v132 = vld [vmem:[#allocation4 + $0x18] sm:$0xff]
    %v133 = vld [vmem:[#allocation4 + $0x20] sm:$0xff]
    %v134 = vld [vmem:[#allocation4 + $0x28] sm:$0xff]
    %v135 = vld [vmem:[#allocation4 + $0x30] sm:$0xff]
    %v136 = vld [vmem:[#allocation4 + $0x38] sm:$0xff]
    %v137 = vld [vmem:[#allocation4 + $0x40] sm:$0xff]
    %v138 = vld [vmem:[#allocation4 + $0x48] sm:$0xff]
    %v139 = vld [vmem:[#allocation4 + $0x50] sm:$0xff]
    %v140 = vld [vmem:[#allocation4 + $0x58] sm:$0xff]
    %v141 = vld [vmem:[#allocation4 + $0x60] sm:$0xff]
    %v142 = vld [vmem:[#allocation4 + $0x68] sm:$0xff]
    %v143 = vld [vmem:[#allocation4 + $0x70] sm:$0xff]
    %v144 = vld [vmem:[#allocation4 + $0x78] sm:$0xff]
    %v145 = vld [vmem:[#allocation4 + $0x80] sm:$0xff]
    %v146 = vld [vmem:[#allocation4 + $0x88] sm:$0xff]
    %v147 = vld [vmem:[#allocation4 + $0x90] sm:$0xff]
    %v148 = vld [vmem:[#allocation4 + $0x98] sm:$0xff]
    %v149 = vld [vmem:[#allocation4 + $0xa0] sm:$0xff]
    %v150 = vld [vmem:[#allocation4 + $0xa8] sm:$0xff]
    %v151 = vld [vmem:[#allocation4 + $0xb0] sm:$0xff]
    %v152 = vld [vmem:[#allocation4 + $0xb8] sm:$0xff]
    %v153 = vld [vmem:[#allocation4 + $0xc0] sm:$0xff]
    %v154 = vld [vmem:[#allocation4 + $0xc8] sm:$0xff]
    %v155 = vld [vmem:[#allocation4 + $0xd0] sm:$0xff]
    %v156 = vld [vmem:[#allocation4 + $0xd8] sm:$0xff]
    %v157 = vld [vmem:[#allocation4 + $0xe0] sm:$0xff]
    %v158 = vld [vmem:[#allocation4 + $0xe8] sm:$0xff]
    %v159 = vld [vmem:[#allocation4 + $0xf0] sm:$0xff]
    %v160 = vld [vmem:[#allocation4 + $0xf8] sm:$0xff]
    %v161 = vld [vmem:[#allocation4 + $0x100] sm:$0xff]
    %v162 = vld [vmem:[#allocation4 + $0x108] sm:$0xff]
    %v163 = vld [vmem:[#allocation4 + $0x110] sm:$0xff]
    %v164 = vld [vmem:[#allocation4 + $0x118] sm:$0xff]
    %v165 = vld [vmem:[#allocation4 + $0x120] sm:$0xff]
    %v166 = vld [vmem:[#allocation4 + $0x128] sm:$0xff]
    %v167 = vld [vmem:[#allocation4 + $0x130] sm:$0xff]
    %v168 = vld [vmem:[#allocation4 + $0x138] sm:$0xff]
    %v169 = vld [vmem:[#allocation4 + $0x140] sm:$0xff]
    %v170 = vld [vmem:[#allocation4 + $0x148] sm:$0xff]
    %v171 = vld [vmem:[#allocation4 + $0x150] sm:$0xff]
    %v172 = vld [vmem:[#allocation4 + $0x158] sm:$0xff]
    %v173 = vld [vmem:[#allocation4 + $0x160] sm:$0xff]
    %v174 = vld [vmem:[#allocation4 + $0x168] sm:$0xff]
    %v175 = vld [vmem:[#allocation4 + $0x170] sm:$0xff]
    %v176 = vld [vmem:[#allocation4 + $0x178] sm:$0xff]
    %v177 = vld [vmem:[#allocation4 + $0x180] sm:$0xff]
    %v178 = vld [vmem:[#allocation4 + $0x188] sm:$0xff]
    %v179 = vld [vmem:[#allocation4 + $0x190] sm:$0xff]
    %v180 = vld [vmem:[#allocation4 + $0x198] sm:$0xff]
    %v181 = vld [vmem:[#allocation4 + $0x1a0] sm:$0xff]
    %v182 = vld [vmem:[#allocation4 + $0x1a8] sm:$0xff]
    %v183 = vld [vmem:[#allocation4 + $0x1b0] sm:$0xff]
    %v184 = vld [vmem:[#allocation4 + $0x1b8] sm:$0xff]
    %v185 = vld [vmem:[#allocation4 + $0x1c0] sm:$0xff]
    %v186 = vld [vmem:[#allocation4 + $0x1c8] sm:$0xff]
    %v187 = vld [vmem:[#allocation4 + $0x1d0] sm:$0xff]
    %v188 = vld [vmem:[#allocation4 + $0x1d8] sm:$0xff]
    %v189 = vld [vmem:[#allocation4 + $0x1e0] sm:$0xff]
    %v190 = vld [vmem:[#allocation4 + $0x1e8] sm:$0xff]
    %v191 = vld [vmem:[#allocation4 + $0x1f0] sm:$0xff]
    %v192 = vld [vmem:[#allocation4 + $0x1f8] sm:$0xff]
    %v193 = vld [vmem:[#allocation4 + $0x200] sm:$0xff]
    %v194 = vld [vmem:[#allocation4 + $0x208] sm:$0xff]
    %v195 = vld [vmem:[#allocation4 + $0x210] sm:$0xff]
    %v196 = vld [vmem:[#allocation4 + $0x218] sm:$0xff]
    %v197 = vld [vmem:[#allocation4 + $0x220] sm:$0xff]
    %v198 = vld [vmem:[#allocation4 + $0x228] sm:$0xff]
    %v199 = vld [vmem:[#allocation4 + $0x230] sm:$0xff]
    %v200 = vld [vmem:[#allocation4 + $0x238] sm:$0xff]
    %v201 = vld [vmem:[#allocation4 + $0x240] sm:$0xff]
    %v202 = vld [vmem:[#allocation4 + $0x248] sm:$0xff]
    %v203 = vld [vmem:[#allocation4 + $0x250] sm:$0xff]
    %v204 = vld [vmem:[#allocation4 + $0x258] sm:$0xff]
    %v205 = vld [vmem:[#allocation4 + $0x260] sm:$0xff]
    %v206 = vld [vmem:[#allocation4 + $0x268] sm:$0xff]
    %v207 = vld [vmem:[#allocation4 + $0x270] sm:$0xff]
    %v208 = vld [vmem:[#allocation4 + $0x278] sm:$0xff]
    %v209 = vld [vmem:[#allocation4 + $0x280] sm:$0xff]
    %v210 = vld [vmem:[#allocation4 + $0x288] sm:$0xff]
    %v211 = vld [vmem:[#allocation4 + $0x290] sm:$0xff]
    %v212 = vld [vmem:[#allocation4 + $0x298] sm:$0xff]
    %v213 = vld [vmem:[#allocation4 + $0x2a0] sm:$0xff]
    %v214 = vld [vmem:[#allocation4 + $0x2a8] sm:$0xff]
    %v215 = vld [vmem:[#allocation4 + $0x2b0] sm:$0xff]
    %v216 = vld [vmem:[#allocation4 + $0x2b8] sm:$0xff]
    %v217 = vld [vmem:[#allocation4 + $0x2c0] sm:$0xff]
    %v218 = vld [vmem:[#allocation4 + $0x2c8] sm:$0xff]
    %v219 = vld [vmem:[#allocation4 + $0x2d0] sm:$0xff]
    %v220 = vld [vmem:[#allocation4 + $0x2d8] sm:$0xff]
    %v221 = vld [vmem:[#allocation4 + $0x2e0] sm:$0xff]
    %v222 = vld [vmem:[#allocation4 + $0x2e8] sm:$0xff]
    %v223 = vld [vmem:[#allocation4 + $0x2f0] sm:$0xff]
    %v224 = vld [vmem:[#allocation4 + $0x2f8] sm:$0xff]
    %v225 = vld [vmem:[#allocation4 + $0x300] sm:$0xff]
    %v226 = vld [vmem:[#allocation4 + $0x308] sm:$0xff]
    %v227 = vld [vmem:[#allocation4 + $0x310] sm:$0xff]
    %v228 = vld [vmem:[#allocation4 + $0x318] sm:$0xff]
    %v229 = vld [vmem:[#allocation4 + $0x320] sm:$0xff]
    %v230 = vld [vmem:[#allocation4 + $0x328] sm:$0xff]
    %v231 = vld [vmem:[#allocation4 + $0x330] sm:$0xff]
    %v232 = vld [vmem:[#allocation4 + $0x338] sm:$0xff]
    %v233 = vld [vmem:[#allocation4 + $0x340] sm:$0xff]
    %v234 = vld [vmem:[#allocation4 + $0x348] sm:$0xff]
    %v235 = vld [vmem:[#allocation4 + $0x350] sm:$0xff]
    %v236 = vld [vmem:[#allocation4 + $0x358] sm:$0xff]
    %v237 = vld [vmem:[#allocation4 + $0x360] sm:$0xff]
    %v238 = vld [vmem:[#allocation4 + $0x368] sm:$0xff]
    %v239 = vld [vmem:[#allocation4 + $0x370] sm:$0xff]
    %v240 = vld [vmem:[#allocation4 + $0x378] sm:$0xff]
    %v241 = vld [vmem:[#allocation4 + $0x380] sm:$0xff]
    %v242 = vld [vmem:[#allocation4 + $0x388] sm:$0xff]
    %v243 = vld [vmem:[#allocation4 + $0x390] sm:$0xff]
    %v244 = vld [vmem:[#allocation4 + $0x398] sm:$0xff]
    %v245 = vld [vmem:[#allocation4 + $0x3a0] sm:$0xff]
    %v246 = vld [vmem:[#allocation4 + $0x3a8] sm:$0xff]
    %v247 = vld [vmem:[#allocation4 + $0x3b0] sm:$0xff]
    %v248 = vld [vmem:[#allocation4 + $0x3b8] sm:$0xff]
    %v249 = vld [vmem:[#allocation4 + $0x3c0] sm:$0xff]
    %v250 = vld [vmem:[#allocation4 + $0x3c8] sm:$0xff]
    %v251 = vld [vmem:[#allocation4 + $0x3d0] sm:$0xff]
    %v252 = vld [vmem:[#allocation4 + $0x3d8] sm:$0xff]
    %v253 = vld [vmem:[#allocation4 + $0x3e0] sm:$0xff]
    %v254 = vld [vmem:[#allocation4 + $0x3e8] sm:$0xff]
    %v255 = vld [vmem:[#allocation4 + $0x3f0] sm:$0xff]
    %v256 = vld [vmem:[#allocation4 + $0x3f8] sm:$0xff]
    %v257 = vlaneseq
    %v258 = vshrl.u32 %v257, 7
    %v259 = vsub.s32 0, %v258
    %v260 = vrot.slane %v64, %v259
    %261 = vmatprep.subr.mxu0 0.0
    %262 = vmatpush1.msra.mxu0 %v129
    %263 = vmatprep.subr.mxu0 0.0
    %264 = vmatpush1.msra.mxu0 %v130
    %265 = vmatprep.subr.mxu0 0.0
    %266 = vmatpush1.msra.mxu0 %v131
    %267 = vmatprep.subr.mxu0 0.0
    %268 = vmatpush1.msra.mxu0 %v132
    %269 = vmatprep.subr.mxu0 0.0
    %270 = vmatpush1.msra.mxu0 %v133
    %271 = vmatprep.subr.mxu0 0.0
    %272 = vmatpush1.msra.mxu0 %v134
    %273 = vmatprep.subr.mxu0 0.0
    %274 = vmatpush1.msra.mxu0 %v135
    %275 = vmatprep.subr.mxu0 0.0
    %276 = vmatpush1.msra.mxu0 %v136
    %277 = vmatprep.subr.mxu0 0.0
    %278 = vmatpush1.msra.mxu0 %v137
    %279 = vmatprep.subr.mxu0 0.0
    %280 = vmatpush1.msra.mxu0 %v138
    %281 = vmatprep.subr.mxu0 0.0
    %282 = vmatpush1.msra.mxu0 %v139
    %283 = vmatprep.subr.mxu0 0.0
    %284 = vmatpush1.msra.mxu0 %v140
    %285 = vmatprep.subr.mxu0 0.0
    %286 = vmatpush1.msra.mxu0 %v141
    %287 = vmatprep.subr.mxu0 0.0
    %288 = vmatpush1.msra.mxu0 %v142
    %289 = vmatprep.subr.mxu0 0.0
    %290 = vmatpush1.msra.mxu0 %v143
    %291 = vmatprep.subr.mxu0 0.0
    %292 = vmatpush1.msra.mxu0 %v144
    %293 = vmatprep.subr.mxu0 0.0
    %294 = vmatpush1.msra.mxu0 %v145
    %295 = vmatprep.subr.mxu0 0.0
    %296 = vmatpush1.msra.mxu0 %v146
    %297 = vmatprep.subr.mxu0 0.0
    %298 = vmatpush1.msra.mxu0 %v147
    %299 = vmatprep.subr.mxu0 0.0
    %300 = vmatpush1.msra.mxu0 %v148
    %301 = vmatprep.subr.mxu0 0.0
    %302 = vmatpush1.msra.mxu0 %v149
    %303 = vmatprep.subr.mxu0 0.0
    %304 = vmatpush1.msra.mxu0 %v150
    %305 = vmatprep.subr.mxu0 0.0
    %306 = vmatpush1.msra.mxu0 %v151
    %307 = vmatprep.subr.mxu0 0.0
    %308 = vmatpush1.msra.mxu0 %v152
    %309 = vmatprep.subr.mxu0 0.0
    %310 = vmatpush1.msra.mxu0 %v153
    %311 = vmatprep.subr.mxu0 0.0
    %312 = vmatpush1.msra.mxu0 %v154
    %313 = vmatprep.subr.mxu0 0.0
    %314 = vmatpush1.msra.mxu0 %v155
    %315 = vmatprep.subr.mxu0 0.0
    %316 = vmatpush1.msra.mxu0 %v156
    %317 = vmatprep.subr.mxu0 0.0
    %318 = vmatpush1.msra.mxu0 %v157
    %319 = vmatprep.subr.mxu0 0.0
    %320 = vmatpush1.msra.mxu0 %v158
    %321 = vmatprep.subr.mxu0 0.0
    %322 = vmatpush1.msra.mxu0 %v159
    %323 = vmatprep.subr.mxu0 0.0
    %324 = vmatpush1.msra.mxu0 %v160
    %325 = vmatprep.mubr.f32.mxu0 %v66
    %326 = vmatmul.mubr.f32.gmra.mrb[0].mxu0 %v65
    %v327 = vpop.f32.mrb[0].mxu0
    %v328 = vadd.f32 %v260, %v327
    %v329 = vpop.f32.mrb[0].mxu0
    %330 = vmatprep.mubr.f32.mxu0 %v74
    %331 = vmatmul.mubr.f32.gmra.mrb[0].mxu0 %v73
    %v332 = vpop.f32.mrb[0].mxu0
    %v333 = vadd.f32 %v260, %v332
    %v334 = vpop.f32.mrb[0].mxu0
    %335 = vmatprep.mubr.f32.mxu0 %v82
    %336 = vmatmul.mubr.f32.gmra.mrb[0].mxu0 %v81
    %v337 = vpop.f32.mrb[0].mxu0
    %v338 = vadd.f32 %v260, %v337
    %v339 = vpop.f32.mrb[0].mxu0
    %340 = vmatprep.mubr.f32.mxu0 %v90
    %341 = vmatmul.mubr.f32.gmra.mrb[0].mxu0 %v89
    %v342 = vpop.f32.mrb[0].mxu0
    %v343 = vadd.f32 %v260, %v342
    %v344 = vpop.f32.mrb[0].mxu0
    %345 = vmatprep.mubr.f32.mxu0 %v98
    %346 = vmatmul.mubr.f32.gmra.mrb[0].mxu0 %v97
    %v347 = vpop.f32.mrb[0].mxu0
    %v348 = vadd.f32 %v260, %v347
    %v349 = vpop.f32.mrb[0].mxu0
    %350 = vmatprep.mubr.f32.mxu0 %v106
    %351 = vmatmul.mubr.f32.gmra.mrb[0].mxu0 %v105
    %v352 = vpop.f32.mrb[0].mxu0
    %v353 = vadd.f32 %v260, %v352
    %v354 = vpop.f32.mrb[0].mxu0
    %355 = vmatprep.mubr.f32.mxu0 %v114
    %356 = vmatmul.mubr.f32.gmra.mrb[0].mxu0 %v113
    %v357 = vpop.f32.mrb[0].mxu0
    %v358 = vadd.f32 %v260, %v357
    %v359 = vpop.f32.mrb[0].mxu0
    %360 = vmatprep.mubr.f32.mxu0 %v122
    %361 = vmatmul.mubr.f32.gmra.mrb[0].mxu0 %v121
    %v362 = vpop.f32.mrb[0].mxu0
    %v363 = vadd.f32 %v260, %v362
    %v364 = vpop.f32.mrb[0].mxu0
    %365 = vdwg.mxu0
    %366 = vmatprep.subr.mxu0 0.0
    %367 = vmatpush1.msra.mxu0 %v161
    %368 = vmatprep.subr.mxu0 0.0
    %369 = vmatpush1.msra.mxu0 %v162
    %370 = vmatprep.subr.mxu0 0.0
    %371 = vmatpush1.msra.mxu0 %v163
    %372 = vmatprep.subr.mxu0 0.0
    %373 = vmatpush1.msra.mxu0 %v164
    %374 = vmatprep.subr.mxu0 0.0
    %375 = vmatpush1.msra.mxu0 %v165
    %376 = vmatprep.subr.mxu0 0.0
    %377 = vmatpush1.msra.mxu0 %v166
    %378 = vmatprep.subr.mxu0 0.0
    %379 = vmatpush1.msra.mxu0 %v167
    %380 = vmatprep.subr.mxu0 0.0
    %381 = vmatpush1.msra.mxu0 %v168
    %382 = vmatprep.subr.mxu0 0.0
    %383 = vmatpush1.msra.mxu0 %v169
    %384 = vmatprep.subr.mxu0 0.0
    %385 = vmatpush1.msra.mxu0 %v170
    %386 = vmatprep.subr.mxu0 0.0
    %387 = vmatpush1.msra.mxu0 %v171
    %388 = vmatprep.subr.mxu0 0.0
    %389 = vmatpush1.msra.mxu0 %v172
    %390 = vmatprep.subr.mxu0 0.0
    %391 = vmatpush1.msra.mxu0 %v173
    %392 = vmatprep.subr.mxu0 0.0
    %393 = vmatpush1.msra.mxu0 %v174
    %394 = vmatprep.subr.mxu0 0.0
    %395 = vmatpush1.msra.mxu0 %v175
    %396 = vmatprep.subr.mxu0 0.0
    %397 = vmatpush1.msra.mxu0 %v176
    %398 = vmatprep.subr.mxu0 0.0
    %399 = vmatpush1.msra.mxu0 %v177
    %400 = vmatprep.subr.mxu0 0.0
    %401 = vmatpush1.msra.mxu0 %v178
    %402 = vmatprep.subr.mxu0 0.0
    %403 = vmatpush1.msra.mxu0 %v179
    %404 = vmatprep.subr.mxu0 0.0
    %405 = vmatpush1.msra.mxu0 %v180
    %406 = vmatprep.subr.mxu0 0.0
    %407 = vmatpush1.msra.mxu0 %v181
    %408 = vmatprep.subr.mxu0 0.0
    %409 = vmatpush1.msra.mxu0 %v182
    %410 = vmatprep.subr.mxu0 0.0
    %411 = vmatpush1.msra.mxu0 %v183
    %412 = vmatprep.subr.mxu0 0.0
    %413 = vmatpush1.msra.mxu0 %v184
    %414 = vmatprep.subr.mxu0 0.0
    %415 = vmatpush1.msra.mxu0 %v185
    %416 = vmatprep.subr.mxu0 0.0
    %417 = vmatpush1.msra.mxu0 %v186
    %418 = vmatprep.subr.mxu0 0.0
    %419 = vmatpush1.msra.mxu0 %v187
    %420 = vmatprep.subr.mxu0 0.0
    %421 = vmatpush1.msra.mxu0 %v188
    %422 = vmatprep.subr.mxu0 0.0
    %423 = vmatpush1.msra.mxu0 %v189
    %424 = vmatprep.subr.mxu0 0.0
    %425 = vmatpush1.msra.mxu0 %v190
    %426 = vmatprep.subr.mxu0 0.0
    %427 = vmatpush1.msra.mxu0 %v191
    %428 = vmatprep.subr.mxu0 0.0
    %429 = vmatpush1.msra.mxu0 %v192
    %430 = vmatprep.mubr.f32.mxu0 %v68
    %431 = vmatmul.mubr.f32.gmra.mrb[0].mxu0 %v67
    %v432 = vpop.f32.mrb[0].mxu0
    %v433 = vadd.f32 %v328, %v432
    %v434 = vpop.f32.mrb[0].mxu0
    %435 = vmatprep.mubr.f32.mxu0 %v76
    %436 = vmatmul.mubr.f32.gmra.mrb[0].mxu0 %v75
    %v437 = vpop.f32.mrb[0].mxu0
    %v438 = vadd.f32 %v333, %v437
    %v439 = vpop.f32.mrb[0].mxu0
    %440 = vmatprep.mubr.f32.mxu0 %v84
    %441 = vmatmul.mubr.f32.gmra.mrb[0].mxu0 %v83
    %v442 = vpop.f32.mrb[0].mxu0
    %v443 = vadd.f32 %v338, %v442
    %v444 = vpop.f32.mrb[0].mxu0
    %445 = vmatprep.mubr.f32.mxu0 %v92
    %446 = vmatmul.mubr.f32.gmra.mrb[0].mxu0 %v91
    %v447 = vpop.f32.mrb[0].mxu0
    %v448 = vadd.f32 %v343, %v447
    %v449 = vpop.f32.mrb[0].mxu0
    %450 = vmatprep.mubr.f32.mxu0 %v100
    %451 = vmatmul.mubr.f32.gmra.mrb[0].mxu0 %v99
    %v452 = vpop.f32.mrb[0].mxu0
    %v453 = vadd.f32 %v348, %v452
    %v454 = vpop.f32.mrb[0].mxu0
    %455 = vmatprep.mubr.f32.mxu0 %v108
    %456 = vmatmul.mubr.f32.gmra.mrb[0].mxu0 %v107
    %v457 = vpop.f32.mrb[0].mxu0
    %v458 = vadd.f32 %v353, %v457
    %v459 = vpop.f32.mrb[0].mxu0
    %460 = vmatprep.mubr.f32.mxu0 %v116
    %461 = vmatmul.mubr.f32.gmra.mrb[0].mxu0 %v115
    %v462 = vpop.f32.mrb[0].mxu0
    %v463 = vadd.f32 %v358, %v462
    %v464 = vpop.f32.mrb[0].mxu0
    %465 = vmatprep.mubr.f32.mxu0 %v124
    %466 = vmatmul.mubr.f32.gmra.mrb[0].mxu0 %v123
    %v467 = vpop.f32.mrb[0].mxu0
    %v468 = vadd.f32 %v363, %v467
    %v469 = vpop.f32.mrb[0].mxu0
    %470 = vdwg.mxu0
    %471 = vmatprep.subr.mxu0 0.0
    %472 = vmatpush1.msra.mxu0 %v193
    %473 = vmatprep.subr.mxu0 0.0
    %474 = vmatpush1.msra.mxu0 %v194
    %475 = vmatprep.subr.mxu0 0.0
    %476 = vmatpush1.msra.mxu0 %v195
    %477 = vmatprep.subr.mxu0 0.0
    %478 = vmatpush1.msra.mxu0 %v196
    %479 = vmatprep.subr.mxu0 0.0
    %480 = vmatpush1.msra.mxu0 %v197
    %481 = vmatprep.subr.mxu0 0.0
    %482 = vmatpush1.msra.mxu0 %v198
    %483 = vmatprep.subr.mxu0 0.0
    %484 = vmatpush1.msra.mxu0 %v199
    %485 = vmatprep.subr.mxu0 0.0
    %486 = vmatpush1.msra.mxu0 %v200
    %487 = vmatprep.subr.mxu0 0.0
    %488 = vmatpush1.msra.mxu0 %v201
    %489 = vmatprep.subr.mxu0 0.0
    %490 = vmatpush1.msra.mxu0 %v202
    %491 = vmatprep.subr.mxu0 0.0
    %492 = vmatpush1.msra.mxu0 %v203
    %493 = vmatprep.subr.mxu0 0.0
    %494 = vmatpush1.msra.mxu0 %v204
    %495 = vmatprep.subr.mxu0 0.0
    %496 = vmatpush1.msra.mxu0 %v205
    %497 = vmatprep.subr.mxu0 0.0
    %498 = vmatpush1.msra.mxu0 %v206
    %499 = vmatprep.subr.mxu0 0.0
    %500 = vmatpush1.msra.mxu0 %v207
    %501 = vmatprep.subr.mxu0 0.0
    %502 = vmatpush1.msra.mxu0 %v208
    %503 = vmatprep.subr.mxu0 0.0
    %504 = vmatpush1.msra.mxu0 %v209
    %505 = vmatprep.subr.mxu0 0.0
    %506 = vmatpush1.msra.mxu0 %v210
    %507 = vmatprep.subr.mxu0 0.0
    %508 = vmatpush1.msra.mxu0 %v211
    %509 = vmatprep.subr.mxu0 0.0
    %510 = vmatpush1.msra.mxu0 %v212
    %511 = vmatprep.subr.mxu0 0.0
    %512 = vmatpush1.msra.mxu0 %v213
    %513 = vmatprep.subr.mxu0 0.0
    %514 = vmatpush1.msra.mxu0 %v214
    %515 = vmatprep.subr.mxu0 0.0
    %516 = vmatpush1.msra.mxu0 %v215
    %517 = vmatprep.subr.mxu0 0.0
    %518 = vmatpush1.msra.mxu0 %v216
    %519 = vmatprep.subr.mxu0 0.0
    %520 = vmatpush1.msra.mxu0 %v217
    %521 = vmatprep.subr.mxu0 0.0
    %522 = vmatpush1.msra.mxu0 %v218
    %523 = vmatprep.subr.mxu0 0.0
    %524 = vmatpush1.msra.mxu0 %v219
    %525 = vmatprep.subr.mxu0 0.0
    %526 = vmatpush1.msra.mxu0 %v220
    %527 = vmatprep.subr.mxu0 0.0
    %528 = vmatpush1.msra.mxu0 %v221
    %529 = vmatprep.subr.mxu0 0.0
    %530 = vmatpush1.msra.mxu0 %v222
    %531 = vmatprep.subr.mxu0 0.0
    %532 = vmatpush1.msra.mxu0 %v223
    %533 = vmatprep.subr.mxu0 0.0
    %534 = vmatpush1.msra.mxu0 %v224
    %535 = vmatprep.mubr.f32.mxu0 %v70
    %536 = vmatmul.mubr.f32.gmra.mrb[0].mxu0 %v69
    %v537 = vpop.f32.mrb[0].mxu0
    %v538 = vadd.f32 %v433, %v537
    %v539 = vpop.f32.mrb[0].mxu0
    %540 = vmatprep.mubr.f32.mxu0 %v78
    %541 = vmatmul.mubr.f32.gmra.mrb[0].mxu0 %v77
    %v542 = vpop.f32.mrb[0].mxu0
    %v543 = vadd.f32 %v438, %v542
    %v544 = vpop.f32.mrb[0].mxu0
    %545 = vmatprep.mubr.f32.mxu0 %v86
    %546 = vmatmul.mubr.f32.gmra.mrb[0].mxu0 %v85
    %v547 = vpop.f32.mrb[0].mxu0
    %v548 = vadd.f32 %v443, %v547
    %v549 = vpop.f32.mrb[0].mxu0
    %550 = vmatprep.mubr.f32.mxu0 %v94
    %551 = vmatmul.mubr.f32.gmra.mrb[0].mxu0 %v93
    %v552 = vpop.f32.mrb[0].mxu0
    %v553 = vadd.f32 %v448, %v552
    %v554 = vpop.f32.mrb[0].mxu0
    %555 = vmatprep.mubr.f32.mxu0 %v102
    %556 = vmatmul.mubr.f32.gmra.mrb[0].mxu0 %v101
    %v557 = vpop.f32.mrb[0].mxu0
    %v558 = vadd.f32 %v453, %v557
    %v559 = vpop.f32.mrb[0].mxu0
    %560 = vmatprep.mubr.f32.mxu0 %v110
    %561 = vmatmul.mubr.f32.gmra.mrb[0].mxu0 %v109
    %v562 = vpop.f32.mrb[0].mxu0
    %v563 = vadd.f32 %v458, %v562
    %v564 = vpop.f32.mrb[0].mxu0
    %565 = vmatprep.mubr.f32.mxu0 %v118
    %566 = vmatmul.mubr.f32.gmra.mrb[0].mxu0 %v117
    %v567 = vpop.f32.mrb[0].mxu0
    %v568 = vadd.f32 %v463, %v567
    %v569 = vpop.f32.mrb[0].mxu0
    %570 = vmatprep.mubr.f32.mxu0 %v126
    %571 = vmatmul.mubr.f32.gmra.mrb[0].mxu0 %v125
    %v572 = vpop.f32.mrb[0].mxu0
    %v573 = vadd.f32 %v468, %v572
    %v574 = vpop.f32.mrb[0].mxu0
    %575 = vdwg.mxu0
    %576 = vmatprep.subr.mxu0 0.0
    %577 = vmatpush1.msra.mxu0 %v225
    %578 = vmatprep.subr.mxu0 0.0
    %579 = vmatpush1.msra.mxu0 %v226
    %580 = vmatprep.subr.mxu0 0.0
    %581 = vmatpush1.msra.mxu0 %v227
    %582 = vmatprep.subr.mxu0 0.0
    %583 = vmatpush1.msra.mxu0 %v228
    %584 = vmatprep.subr.mxu0 0.0
    %585 = vmatpush1.msra.mxu0 %v229
    %586 = vmatprep.subr.mxu0 0.0
    %587 = vmatpush1.msra.mxu0 %v230
    %588 = vmatprep.subr.mxu0 0.0
    %589 = vmatpush1.msra.mxu0 %v231
    %590 = vmatprep.subr.mxu0 0.0
    %591 = vmatpush1.msra.mxu0 %v232
    %592 = vmatprep.subr.mxu0 0.0
    %593 = vmatpush1.msra.mxu0 %v233
    %594 = vmatprep.subr.mxu0 0.0
    %595 = vmatpush1.msra.mxu0 %v234
    %596 = vmatprep.subr.mxu0 0.0
    %597 = vmatpush1.msra.mxu0 %v235
    %598 = vmatprep.subr.mxu0 0.0
    %599 = vmatpush1.msra.mxu0 %v236
    %600 = vmatprep.subr.mxu0 0.0
    %601 = vmatpush1.msra.mxu0 %v237
    %602 = vmatprep.subr.mxu0 0.0
    %603 = vmatpush1.msra.mxu0 %v238
    %604 = vmatprep.subr.mxu0 0.0
    %605 = vmatpush1.msra.mxu0 %v239
    %606 = vmatprep.subr.mxu0 0.0
    %607 = vmatpush1.msra.mxu0 %v240
    %608 = vmatprep.subr.mxu0 0.0
    %609 = vmatpush1.msra.mxu0 %v241
    %610 = vmatprep.subr.mxu0 0.0
    %611 = vmatpush1.msra.mxu0 %v242
    %612 = vmatprep.subr.mxu0 0.0
    %613 = vmatpush1.msra.mxu0 %v243
    %614 = vmatprep.subr.mxu0 0.0
    %615 = vmatpush1.msra.mxu0 %v244
    %616 = vmatprep.subr.mxu0 0.0
    %617 = vmatpush1.msra.mxu0 %v245
    %618 = vmatprep.subr.mxu0 0.0
    %619 = vmatpush1.msra.mxu0 %v246
    %620 = vmatprep.subr.mxu0 0.0
    %621 = vmatpush1.msra.mxu0 %v247
    %622 = vmatprep.subr.mxu0 0.0
    %623 = vmatpush1.msra.mxu0 %v248
    %624 = vmatprep.subr.mxu0 0.0
    %625 = vmatpush1.msra.mxu0 %v249
    %626 = vmatprep.subr.mxu0 0.0
    %627 = vmatpush1.msra.mxu0 %v250
    %628 = vmatprep.subr.mxu0 0.0
    %629 = vmatpush1.msra.mxu0 %v251
    %630 = vmatprep.subr.mxu0 0.0
    %631 = vmatpush1.msra.mxu0 %v252
    %632 = vmatprep.subr.mxu0 0.0
    %633 = vmatpush1.msra.mxu0 %v253
    %634 = vmatprep.subr.mxu0 0.0
    %635 = vmatpush1.msra.mxu0 %v254
    %636 = vmatprep.subr.mxu0 0.0
    %637 = vmatpush1.msra.mxu0 %v255
    %638 = vmatprep.subr.mxu0 0.0
    %639 = vmatpush1.msra.mxu0 %v256
    %640 = vmatprep.mubr.f32.mxu0 %v72
    %641 = vmatmul.mubr.f32.gmra.mrb[0].mxu0 %v71
    %v642 = vpop.f32.mrb[0].mxu0
    %v643 = vadd.f32 %v538, %v642
    %v644 = vpop.f32.mrb[0].mxu0
    %645 = vmatprep.mubr.f32.mxu0 %v80
    %646 = vmatmul.mubr.f32.gmra.mrb[0].mxu0 %v79
    %v647 = vpop.f32.mrb[0].mxu0
    %v648 = vadd.f32 %v543, %v647
    %v649 = vpop.f32.mrb[0].mxu0
    %650 = vmatprep.mubr.f32.mxu0 %v88
    %651 = vmatmul.mubr.f32.gmra.mrb[0].mxu0 %v87
    %v652 = vpop.f32.mrb[0].mxu0
    %v653 = vadd.f32 %v548, %v652
    %v654 = vpop.f32.mrb[0].mxu0
    %655 = vmatprep.mubr.f32.mxu0 %v96
    %656 = vmatmul.mubr.f32.gmra.mrb[0].mxu0 %v95
    %v657 = vpop.f32.mrb[0].mxu0
    %v658 = vadd.f32 %v553, %v657
    %v659 = vpop.f32.mrb[0].mxu0
    %660 = vmatprep.mubr.f32.mxu0 %v104
    %661 = vmatmul.mubr.f32.gmra.mrb[0].mxu0 %v103
    %v662 = vpop.f32.mrb[0].mxu0
    %v663 = vadd.f32 %v558, %v662
    %v664 = vpop.f32.mrb[0].mxu0
    %665 = vmatprep.mubr.f32.mxu0 %v112
    %666 = vmatmul.mubr.f32.gmra.mrb[0].mxu0 %v111
    %v667 = vpop.f32.mrb[0].mxu0
    %v668 = vadd.f32 %v563, %v667
    %v669 = vpop.f32.mrb[0].mxu0
    %670 = vmatprep.mubr.f32.mxu0 %v120
    %671 = vmatmul.mubr.f32.gmra.mrb[0].mxu0 %v119
    %v672 = vpop.f32.mrb[0].mxu0
    %v673 = vadd.f32 %v568, %v672
    %v674 = vpop.f32.mrb[0].mxu0
    %675 = vmatprep.mubr.f32.mxu0 %v128
    %676 = vmatmul.mubr.f32.gmra.mrb[0].mxu0 %v127
    %v677 = vpop.f32.mrb[0].mxu0
    %v678 = vadd.f32 %v573, %v677
    %v679 = vpop.f32.mrb[0].mxu0
    %680 = vdwg.mxu0
    %v681 = vmax.f32 %v643, 0.0
    %v682 = vmax.f32 %v648, 0.0
    %v683 = vmax.f32 %v653, 0.0
    %v684 = vmax.f32 %v658, 0.0
    %v685 = vmax.f32 %v663, 0.0
    %v686 = vmax.f32 %v668, 0.0
    %v687 = vmax.f32 %v673, 0.0
    %v688 = vmax.f32 %v678, 0.0
    %v689 = vld [vmem:[#allocation6] sm:$0xff]
    %v690 = vld [vmem:[#allocation6 + $0x8] sm:$0xff]
    %v691 = vld [vmem:[#allocation6 + $0x10] sm:$0xff]
    %v692 = vld [vmem:[#allocation6 + $0x18] sm:$0xff]
    %v693 = vld [vmem:[#allocation6 + $0x20] sm:$0xff]
    %v694 = vld [vmem:[#allocation6 + $0x28] sm:$0xff]
    %v695 = vld [vmem:[#allocation6 + $0x30] sm:$0xff]
    %v696 = vld [vmem:[#allocation6 + $0x38] sm:$0xff]
    %v697 = vld [vmem:[#allocation6 + $0x40] sm:$0xff]
    %v698 = vld [vmem:[#allocation6 + $0x48] sm:$0xff]
    %v699 = vld [vmem:[#allocation6 + $0x50] sm:$0xff]
    %v700 = vld [vmem:[#allocation6 + $0x58] sm:$0xff]
    %v701 = vld [vmem:[#allocation6 + $0x60] sm:$0xff]
    %v702 = vld [vmem:[#allocation6 + $0x68] sm:$0xff]
    %v703 = vld [vmem:[#allocation6 + $0x70] sm:$0xff]
    %v704 = vld [vmem:[#allocation6 + $0x78] sm:$0xff]
    %705 = vmatprep.subr.mxu0 0.0
    %706 = vmatpush1.msra.mxu0 %v689
    %707 = vmatprep.subr.mxu0 0.0
    %708 = vmatpush1.msra.mxu0 %v690
    %709 = vmatprep.subr.mxu0 0.0
    %710 = vmatpush1.msra.mxu0 %v691
    %711 = vmatprep.subr.mxu0 0.0
    %712 = vmatpush1.msra.mxu0 %v692
    %713 = vmatprep.subr.mxu0 0.0
    %714 = vmatpush1.msra.mxu0 %v693
    %715 = vmatprep.subr.mxu0 0.0
    %716 = vmatpush1.msra.mxu0 %v694
    %717 = vmatprep.subr.mxu0 0.0
    %718 = vmatpush1.msra.mxu0 %v695
    %719 = vmatprep.subr.mxu0 0.0
    %720 = vmatpush1.msra.mxu0 %v696
    %721 = vmatprep.subr.mxu0 0.0
    %722 = vmatpush1.msra.mxu0 %v697
    %723 = vmatprep.subr.mxu0 0.0
    %724 = vmatpush1.msra.mxu0 %v698
    %725 = vmatprep.subr.mxu0 0.0
    %726 = vmatpush1.msra.mxu0 %v699
    %727 = vmatprep.subr.mxu0 0.0
    %728 = vmatpush1.msra.mxu0 %v700
    %729 = vmatprep.subr.mxu0 0.0
    %730 = vmatpush1.msra.mxu0 %v701
    %731 = vmatprep.subr.mxu0 0.0
    %732 = vmatpush1.msra.mxu0 %v702
    %733 = vmatprep.subr.mxu0 0.0
    %734 = vmatpush1.msra.mxu0 %v703
    %735 = vmatprep.subr.mxu0 0.0
    %736 = vmatpush1.msra.mxu0 %v704
    %737 = vmatprep.subr.mxu0 0.0
    %738 = vmatpush1.msra.mxu0 0.0
    %739 = vmatprep.subr.mxu0 0.0
    %740 = vmatpush1.msra.mxu0 0.0
    %741 = vmatprep.subr.mxu0 0.0
    %742 = vmatpush1.msra.mxu0 0.0
    %743 = vmatprep.subr.mxu0 0.0
    %744 = vmatpush1.msra.mxu0 0.0
    %745 = vmatprep.subr.mxu0 0.0
    %746 = vmatpush1.msra.mxu0 0.0
    %747 = vmatprep.subr.mxu0 0.0
    %748 = vmatpush1.msra.mxu0 0.0
    %749 = vmatprep.subr.mxu0 0.0
    %750 = vmatpush1.msra.mxu0 0.0
    %751 = vmatprep.subr.mxu0 0.0
    %752 = vmatpush1.msra.mxu0 0.0
    %753 = vmatprep.subr.mxu0 0.0
    %754 = vmatpush1.msra.mxu0 0.0
    %755 = vmatprep.subr.mxu0 0.0
    %756 = vmatpush1.msra.mxu0 0.0
    %757 = vmatprep.subr.mxu0 0.0
    %758 = vmatpush1.msra.mxu0 0.0
    %759 = vmatprep.subr.mxu0 0.0
    %760 = vmatpush1.msra.mxu0 0.0
    %761 = vmatprep.subr.mxu0 0.0
    %762 = vmatpush1.msra.mxu0 0.0
    %763 = vmatprep.subr.mxu0 0.0
    %764 = vmatpush1.msra.mxu0 0.0
    %765 = vmatprep.subr.mxu0 0.0
    %766 = vmatpush1.msra.mxu0 0.0
    %767 = vmatprep.subr.mxu0 0.0
    %768 = vmatpush1.msra.mxu0 0.0
    %769 = vmatprep.mubr.f32.mxu0 0.0
    %770 = vmatmul.mubr.f32.gmra.mrb[0].mxu0 %v681
    %v771 = vpop.f32.mrb[0].mxu0
    %v772 = vadd.f32 0.0, %v771
    %v773 = vpop.f32.mrb[0].mxu0
    %774 = vmatprep.mubr.f32.mxu0 0.0
    %775 = vmatmul.mubr.f32.gmra.mrb[0].mxu0 %v682
    %v776 = vpop.f32.mrb[0].mxu0
    %v777 = vadd.f32 0.0, %v776
    %v778 = vpop.f32.mrb[0].mxu0
    %779 = vmatprep.mubr.f32.mxu0 0.0
    %780 = vmatmul.mubr.f32.gmra.mrb[0].mxu0 %v683
    %v781 = vpop.f32.mrb[0].mxu0
    %v782 = vadd.f32 0.0, %v781
    %v783 = vpop.f32.mrb[0].mxu0
    %784 = vmatprep.mubr.f32.mxu0 0.0
    %785 = vmatmul.mubr.f32.gmra.mrb[0].mxu0 %v684
    %v786 = vpop.f32.mrb[0].mxu0
    %v787 = vadd.f32 0.0, %v786
    %v788 = vpop.f32.mrb[0].mxu0
    %789 = vmatprep.mubr.f32.mxu0 0.0
    %790 = vmatmul.mubr.f32.gmra.mrb[0].mxu0 %v685
    %v791 = vpop.f32.mrb[0].mxu0
    %v792 = vadd.f32 0.0, %v791
    %v793 = vpop.f32.mrb[0].mxu0
    %794 = vmatprep.mubr.f32.mxu0 0.0
    %795 = vmatmul.mubr.f32.gmra.mrb[0].mxu0 %v686
    %v796 = vpop.f32.mrb[0].mxu0
    %v797 = vadd.f32 0.0, %v796
    %v798 = vpop.f32.mrb[0].mxu0
    %799 = vmatprep.mubr.f32.mxu0 0.0
    %800 = vmatmul.mubr.f32.gmra.mrb[0].mxu0 %v687
    %v801 = vpop.f32.mrb[0].mxu0
    %v802 = vadd.f32 0.0, %v801
    %v803 = vpop.f32.mrb[0].mxu0
    %804 = vmatprep.mubr.f32.mxu0 0.0
    %805 = vmatmul.mubr.f32.gmra.mrb[0].mxu0 %v688
    %v806 = vpop.f32.mrb[0].mxu0
    %v807 = vadd.f32 0.0, %v806
    %v808 = vpop.f32.mrb[0].mxu0
    %809 = vdwg.mxu0
    %v810 = vadd.f32 %v681, %v772
    %v811 = vadd.f32 %v682, %v777
    %v812 = vadd.f32 %v683, %v782
    %v813 = vadd.f32 %v684, %v787
    %v814 = vadd.f32 %v685, %v792
    %v815 = vadd.f32 %v686, %v797
    %v816 = vadd.f32 %v687, %v802
    %v817 = vadd.f32 %v688, %v807
    %v818 = vlaneseq
    %v819 = vshrl.u32 %v818, 7
    %v820 = vsub.s32 1, %v819
    %v821 = vrot.slane %v64, %v820
    %v822 = vadd.f32 %v810, %v821
    %v823 = vadd.f32 %v811, %v821
    %v824 = vadd.f32 %v812, %v821
    %v825 = vadd.f32 %v813, %v821
    %v826 = vadd.f32 %v814, %v821
    %v827 = vadd.f32 %v815, %v821
    %v828 = vadd.f32 %v816, %v821
    %v829 = vadd.f32 %v817, %v821
    %v830 = vmax.f32 %v822, 0.0
    %v831 = vmax.f32 %v823, 0.0
    %v832 = vmax.f32 %v824, 0.0
    %v833 = vmax.f32 %v825, 0.0
    %v834 = vmax.f32 %v826, 0.0
    %v835 = vmax.f32 %v827, 0.0
    %v836 = vmax.f32 %v828, 0.0
    %v837 = vmax.f32 %v829, 0.0
    %s838 = scalar_lea.vmem [#allocation6], 128
    %v839 = vld [vmem:[%s838] sm:$0xff]
    %v840 = vld [vmem:[%s838 + $0x8] sm:$0xff]
    %v841 = vld [vmem:[%s838 + $0x10] sm:$0xff]
    %v842 = vld [vmem:[%s838 + $0x18] sm:$0xff]
    %v843 = vld [vmem:[%s838 + $0x20] sm:$0xff]
    %v844 = vld [vmem:[%s838 + $0x28] sm:$0xff]
    %v845 = vld [vmem:[%s838 + $0x30] sm:$0xff]
    %v846 = vld [vmem:[%s838 + $0x38] sm:$0xff]
    %v847 = vld [vmem:[%s838 + $0x40] sm:$0xff]
    %v848 = vld [vmem:[%s838 + $0x48] sm:$0xff]
    %v849 = vld [vmem:[%s838 + $0x50] sm:$0xff]
    %v850 = vld [vmem:[%s838 + $0x58] sm:$0xff]
    %v851 = vld [vmem:[%s838 + $0x60] sm:$0xff]
    %v852 = vld [vmem:[%s838 + $0x68] sm:$0xff]
    %v853 = vld [vmem:[%s838 + $0x70] sm:$0xff]
    %v854 = vld [vmem:[%s838 + $0x78] sm:$0xff]
    %855 = vmatprep.subr.mxu0 0.0
    %856 = vmatpush1.msra.mxu0 %v839
    %857 = vmatprep.subr.mxu0 0.0
    %858 = vmatpush1.msra.mxu0 %v840
    %859 = vmatprep.subr.mxu0 0.0
    %860 = vmatpush1.msra.mxu0 %v841
    %861 = vmatprep.subr.mxu0 0.0
    %862 = vmatpush1.msra.mxu0 %v842
    %863 = vmatprep.subr.mxu0 0.0
    %864 = vmatpush1.msra.mxu0 %v843
    %865 = vmatprep.subr.mxu0 0.0
    %866 = vmatpush1.msra.mxu0 %v844
    %867 = vmatprep.subr.mxu0 0.0
    %868 = vmatpush1.msra.mxu0 %v845
    %869 = vmatprep.subr.mxu0 0.0
    %870 = vmatpush1.msra.mxu0 %v846
    %871 = vmatprep.subr.mxu0 0.0
    %872 = vmatpush1.msra.mxu0 %v847
    %873 = vmatprep.subr.mxu0 0.0
    %874 = vmatpush1.msra.mxu0 %v848
    %875 = vmatprep.subr.mxu0 0.0
    %876 = vmatpush1.msra.mxu0 %v849
    %877 = vmatprep.subr.mxu0 0.0
    %878 = vmatpush1.msra.mxu0 %v850
    %879 = vmatprep.subr.mxu0 0.0
    %880 = vmatpush1.msra.mxu0 %v851
    %881 = vmatprep.subr.mxu0 0.0
    %882 = vmatpush1.msra.mxu0 %v852
    %883 = vmatprep.subr.mxu0 0.0
    %884 = vmatpush1.msra.mxu0 %v853
    %885 = vmatprep.subr.mxu0 0.0
    %886 = vmatpush1.msra.mxu0 %v854
    %887 = vmatprep.subr.mxu0 0.0
    %888 = vmatpush1.msra.mxu0 0.0
    %889 = vmatprep.subr.mxu0 0.0
    %890 = vmatpush1.msra.mxu0 0.0
    %891 = vmatprep.subr.mxu0 0.0
    %892 = vmatpush1.msra.mxu0 0.0
    %893 = vmatprep.subr.mxu0 0.0
    %894 = vmatpush1.msra.mxu0 0.0
    %895 = vmatprep.subr.mxu0 0.0
    %896 = vmatpush1.msra.mxu0 0.0
    %897 = vmatprep.subr.mxu0 0.0
    %898 = vmatpush1.msra.mxu0 0.0
    %899 = vmatprep.subr.mxu0 0.0
    %900 = vmatpush1.msra.mxu0 0.0
    %901 = vmatprep.subr.mxu0 0.0
    %902 = vmatpush1.msra.mxu0 0.0
    %903 = vmatprep.subr.mxu0 0.0
    %904 = vmatpush1.msra.mxu0 0.0
    %905 = vmatprep.subr.mxu0 0.0
    %906 = vmatpush1.msra.mxu0 0.0
    %907 = vmatprep.subr.mxu0 0.0
    %908 = vmatpush1.msra.mxu0 0.0
    %909 = vmatprep.subr.mxu0 0.0
    %910 = vmatpush1.msra.mxu0 0.0
    %911 = vmatprep.subr.mxu0 0.0
    %912 = vmatpush1.msra.mxu0 0.0
    %913 = vmatprep.subr.mxu0 0.0
    %914 = vmatpush1.msra.mxu0 0.0
    %915 = vmatprep.subr.mxu0 0.0
    %916 = vmatpush1.msra.mxu0 0.0
    %917 = vmatprep.subr.mxu0 0.0
    %918 = vmatpush1.msra.mxu0 0.0
    %919 = vmatprep.mubr.f32.mxu0 0.0
    %920 = vmatmul.mubr.f32.gmra.mrb[0].mxu0 %v830
    %v921 = vpop.f32.mrb[0].mxu0
    %v922 = vadd.f32 0.0, %v921
    %v923 = vpop.f32.mrb[0].mxu0
    %924 = vmatprep.mubr.f32.mxu0 0.0
    %925 = vmatmul.mubr.f32.gmra.mrb[0].mxu0 %v831
    %v926 = vpop.f32.mrb[0].mxu0
    %v927 = vadd.f32 0.0, %v926
    %v928 = vpop.f32.mrb[0].mxu0
    %929 = vmatprep.mubr.f32.mxu0 0.0
    %930 = vmatmul.mubr.f32.gmra.mrb[0].mxu0 %v832
    %v931 = vpop.f32.mrb[0].mxu0
    %v932 = vadd.f32 0.0, %v931
    %v933 = vpop.f32.mrb[0].mxu0
    %934 = vmatprep.mubr.f32.mxu0 0.0
    %935 = vmatmul.mubr.f32.gmra.mrb[0].mxu0 %v833
    %v936 = vpop.f32.mrb[0].mxu0
    %v937 = vadd.f32 0.0, %v936
    %v938 = vpop.f32.mrb[0].mxu0
    %939 = vmatprep.mubr.f32.mxu0 0.0
    %940 = vmatmul.mubr.f32.gmra.mrb[0].mxu0 %v834
    %v941 = vpop.f32.mrb[0].mxu0
    %v942 = vadd.f32 0.0, %v941
    %v943 = vpop.f32.mrb[0].mxu0
    %944 = vmatprep.mubr.f32.mxu0 0.0
    %945 = vmatmul.mubr.f32.gmra.mrb[0].mxu0 %v835
    %v946 = vpop.f32.mrb[0].mxu0
    %v947 = vadd.f32 0.0, %v946
    %v948 = vpop.f32.mrb[0].mxu0
    %949 = vmatprep.mubr.f32.mxu0 0.0
    %950 = vmatmul.mubr.f32.gmra.mrb[0].mxu0 %v836
    %v951 = vpop.f32.mrb[0].mxu0
    %v952 = vadd.f32 0.0, %v951
    %v953 = vpop.f32.mrb[0].mxu0
    %954 = vmatprep.mubr.f32.mxu0 0.0
    %955 = vmatmul.mubr.f32.gmra.mrb[0].mxu0 %v837
    %v956 = vpop.f32.mrb[0].mxu0
    %v957 = vadd.f32 0.0, %v956
    %v958 = vpop.f32.mrb[0].mxu0
    %959 = vdwg.mxu0
    %v960 = vadd.f32 %v830, %v922
    %v961 = vadd.f32 %v831, %v927
    %v962 = vadd.f32 %v832, %v932
    %v963 = vadd.f32 %v833, %v937
    %v964 = vadd.f32 %v834, %v942
    %v965 = vadd.f32 %v835, %v947
    %v966 = vadd.f32 %v836, %v952
    %v967 = vadd.f32 %v837, %v957
    %v968 = vlaneseq
    %v969 = vshrl.u32 %v968, 7
    %v970 = vsub.s32 2, %v969
    %v971 = vrot.slane %v64, %v970
    %v972 = vadd.f32 %v960, %v971
    %v973 = vadd.f32 %v961, %v971
    %v974 = vadd.f32 %v962, %v971
    %v975 = vadd.f32 %v963, %v971
    %v976 = vadd.f32 %v964, %v971
    %v977 = vadd.f32 %v965, %v971
    %v978 = vadd.f32 %v966, %v971
    %v979 = vadd.f32 %v967, %v971
    %v980 = vmax.f32 %v972, 0.0
    %v981 = vmax.f32 %v973, 0.0
    %v982 = vmax.f32 %v974, 0.0
    %v983 = vmax.f32 %v975, 0.0
    %v984 = vmax.f32 %v976, 0.0
    %v985 = vmax.f32 %v977, 0.0
    %v986 = vmax.f32 %v978, 0.0
    %v987 = vmax.f32 %v979, 0.0
    %s988 = scalar_lea.vmem [#allocation6], 256
    %v989 = vld [vmem:[%s988] sm:$0xff]
    %v990 = vld [vmem:[%s988 + $0x8] sm:$0xff]
    %v991 = vld [vmem:[%s988 + $0x10] sm:$0xff]
    %v992 = vld [vmem:[%s988 + $0x18] sm:$0xff]
    %v993 = vld [vmem:[%s988 + $0x20] sm:$0xff]
    %v994 = vld [vmem:[%s988 + $0x28] sm:$0xff]
    %v995 = vld [vmem:[%s988 + $0x30] sm:$0xff]
    %v996 = vld [vmem:[%s988 + $0x38] sm:$0xff]
    %v997 = vld [vmem:[%s988 + $0x40] sm:$0xff]
    %v998 = vld [vmem:[%s988 + $0x48] sm:$0xff]
    %v999 = vld [vmem:[%s988 + $0x50] sm:$0xff]
    %v1000 = vld [vmem:[%s988 + $0x58] sm:$0xff]
    %v1001 = vld [vmem:[%s988 + $0x60] sm:$0xff]
    %v1002 = vld [vmem:[%s988 + $0x68] sm:$0xff]
    %v1003 = vld [vmem:[%s988 + $0x70] sm:$0xff]
    %v1004 = vld [vmem:[%s988 + $0x78] sm:$0xff]
    %1005 = vmatprep.subr.mxu0 0.0
    %1006 = vmatpush1.msra.mxu0 %v989
    %1007 = vmatprep.subr.mxu0 0.0
    %1008 = vmatpush1.msra.mxu0 %v990
    %1009 = vmatprep.subr.mxu0 0.0
    %1010 = vmatpush1.msra.mxu0 %v991
    %1011 = vmatprep.subr.mxu0 0.0
    %1012 = vmatpush1.msra.mxu0 %v992
    %1013 = vmatprep.subr.mxu0 0.0
    %1014 = vmatpush1.msra.mxu0 %v993
    %1015 = vmatprep.subr.mxu0 0.0
    %1016 = vmatpush1.msra.mxu0 %v994
    %1017 = vmatprep.subr.mxu0 0.0
    %1018 = vmatpush1.msra.mxu0 %v995
    %1019 = vmatprep.subr.mxu0 0.0
    %1020 = vmatpush1.msra.mxu0 %v996
    %1021 = vmatprep.subr.mxu0 0.0
    %1022 = vmatpush1.msra.mxu0 %v997
    %1023 = vmatprep.subr.mxu0 0.0
    %1024 = vmatpush1.msra.mxu0 %v998
    %1025 = vmatprep.subr.mxu0 0.0
    %1026 = vmatpush1.msra.mxu0 %v999
    %1027 = vmatprep.subr.mxu0 0.0
    %1028 = vmatpush1.msra.mxu0 %v1000
    %1029 = vmatprep.subr.mxu0 0.0
    %1030 = vmatpush1.msra.mxu0 %v1001
    %1031 = vmatprep.subr.mxu0 0.0
    %1032 = vmatpush1.msra.mxu0 %v1002
    %1033 = vmatprep.subr.mxu0 0.0
    %1034 = vmatpush1.msra.mxu0 %v1003
    %1035 = vmatprep.subr.mxu0 0.0
    %1036 = vmatpush1.msra.mxu0 %v1004
    %1037 = vmatprep.subr.mxu0 0.0
    %1038 = vmatpush1.msra.mxu0 0.0
    %1039 = vmatprep.subr.mxu0 0.0
    %1040 = vmatpush1.msra.mxu0 0.0
    %1041 = vmatprep.subr.mxu0 0.0
    %1042 = vmatpush1.msra.mxu0 0.0
    %1043 = vmatprep.subr.mxu0 0.0
    %1044 = vmatpush1.msra.mxu0 0.0
    %1045 = vmatprep.subr.mxu0 0.0
    %1046 = vmatpush1.msra.mxu0 0.0
    %1047 = vmatprep.subr.mxu0 0.0
    %1048 = vmatpush1.msra.mxu0 0.0
    %1049 = vmatprep.subr.mxu0 0.0
    %1050 = vmatpush1.msra.mxu0 0.0
    %1051 = vmatprep.subr.mxu0 0.0
    %1052 = vmatpush1.msra.mxu0 0.0
    %1053 = vmatprep.subr.mxu0 0.0
    %1054 = vmatpush1.msra.mxu0 0.0
    %1055 = vmatprep.subr.mxu0 0.0
    %1056 = vmatpush1.msra.mxu0 0.0
    %1057 = vmatprep.subr.mxu0 0.0
    %1058 = vmatpush1.msra.mxu0 0.0
    %1059 = vmatprep.subr.mxu0 0.0
    %1060 = vmatpush1.msra.mxu0 0.0
    %1061 = vmatprep.subr.mxu0 0.0
    %1062 = vmatpush1.msra.mxu0 0.0
    %1063 = vmatprep.subr.mxu0 0.0
    %1064 = vmatpush1.msra.mxu0 0.0
    %1065 = vmatprep.subr.mxu0 0.0
    %1066 = vmatpush1.msra.mxu0 0.0
    %1067 = vmatprep.subr.mxu0 0.0
    %1068 = vmatpush1.msra.mxu0 0.0
    %1069 = vmatprep.mubr.f32.mxu0 0.0
    %1070 = vmatmul.mubr.f32.gmra.mrb[0].mxu0 %v980
    %v1071 = vpop.f32.mrb[0].mxu0
    %v1072 = vadd.f32 0.0, %v1071
    %v1073 = vpop.f32.mrb[0].mxu0
    %1074 = vmatprep.mubr.f32.mxu0 0.0
    %1075 = vmatmul.mubr.f32.gmra.mrb[0].mxu0 %v981
    %v1076 = vpop.f32.mrb[0].mxu0
    %v1077 = vadd.f32 0.0, %v1076
    %v1078 = vpop.f32.mrb[0].mxu0
    %1079 = vmatprep.mubr.f32.mxu0 0.0
    %1080 = vmatmul.mubr.f32.gmra.mrb[0].mxu0 %v982
    %v1081 = vpop.f32.mrb[0].mxu0
    %v1082 = vadd.f32 0.0, %v1081
    %v1083 = vpop.f32.mrb[0].mxu0
    %1084 = vmatprep.mubr.f32.mxu0 0.0
    %1085 = vmatmul.mubr.f32.gmra.mrb[0].mxu0 %v983
    %v1086 = vpop.f32.mrb[0].mxu0
    %v1087 = vadd.f32 0.0, %v1086
    %v1088 = vpop.f32.mrb[0].mxu0
    %1089 = vmatprep.mubr.f32.mxu0 0.0
    %1090 = vmatmul.mubr.f32.gmra.mrb[0].mxu0 %v984
    %v1091 = vpop.f32.mrb[0].mxu0
    %v1092 = vadd.f32 0.0, %v1091
    %v1093 = vpop.f32.mrb[0].mxu0
    %1094 = vmatprep.mubr.f32.mxu0 0.0
    %1095 = vmatmul.mubr.f32.gmra.mrb[0].mxu0 %v985
    %v1096 = vpop.f32.mrb[0].mxu0
    %v1097 = vadd.f32 0.0, %v1096
    %v1098 = vpop.f32.mrb[0].mxu0
    %1099 = vmatprep.mubr.f32.mxu0 0.0
    %1100 = vmatmul.mubr.f32.gmra.mrb[0].mxu0 %v986
    %v1101 = vpop.f32.mrb[0].mxu0
    %v1102 = vadd.f32 0.0, %v1101
    %v1103 = vpop.f32.mrb[0].mxu0
    %1104 = vmatprep.mubr.f32.mxu0 0.0
    %1105 = vmatmul.mubr.f32.gmra.mrb[0].mxu0 %v987
    %v1106 = vpop.f32.mrb[0].mxu0
    %v1107 = vadd.f32 0.0, %v1106
    %v1108 = vpop.f32.mrb[0].mxu0
    %1109 = vdwg.mxu0
    %v1110 = vadd.f32 %v980, %v1072
    %v1111 = vadd.f32 %v981, %v1077
    %v1112 = vadd.f32 %v982, %v1082
    %v1113 = vadd.f32 %v983, %v1087
    %v1114 = vadd.f32 %v984, %v1092
    %v1115 = vadd.f32 %v985, %v1097
    %v1116 = vadd.f32 %v986, %v1102
    %v1117 = vadd.f32 %v987, %v1107
    %v1118 = vlaneseq
    %v1119 = vshrl.u32 %v1118, 7
    %v1120 = vsub.s32 3, %v1119
    %v1121 = vrot.slane %v64, %v1120
    %v1122 = vadd.f32 %v1110, %v1121
    %v1123 = vadd.f32 %v1111, %v1121
    %v1124 = vadd.f32 %v1112, %v1121
    %v1125 = vadd.f32 %v1113, %v1121
    %v1126 = vadd.f32 %v1114, %v1121
    %v1127 = vadd.f32 %v1115, %v1121
    %v1128 = vadd.f32 %v1116, %v1121
    %v1129 = vadd.f32 %v1117, %v1121
    %v1130 = vmax.f32 %v1122, 0.0
    %v1131 = vmax.f32 %v1123, 0.0
    %v1132 = vmax.f32 %v1124, 0.0
    %v1133 = vmax.f32 %v1125, 0.0
    %v1134 = vmax.f32 %v1126, 0.0
    %v1135 = vmax.f32 %v1127, 0.0
    %v1136 = vmax.f32 %v1128, 0.0
    %v1137 = vmax.f32 %v1129, 0.0
    %v1138 = vld [vmem:[%s4] sm:$0xff]
    %v1139 = vld [vmem:[%s4 + $0x8] sm:$0xff]
    %v1140 = vld [vmem:[%s4 + $0x10] sm:$0xff]
    %v1141 = vld [vmem:[%s4 + $0x18] sm:$0xff]
    %v1142 = vld [vmem:[%s4 + $0x20] sm:$0xff]
    %v1143 = vld [vmem:[%s4 + $0x28] sm:$0xff]
    %v1144 = vld [vmem:[%s4 + $0x30] sm:$0xff]
    %v1145 = vld [vmem:[%s4 + $0x38] sm:$0xff]
    %v1146 = vld [vmem:[%s4 + $0x40] sm:$0xff]
    %v1147 = vld [vmem:[%s4 + $0x48] sm:$0xff]
    %v1148 = vld [vmem:[%s4 + $0x50] sm:$0xff]
    %v1149 = vld [vmem:[%s4 + $0x58] sm:$0xff]
    %v1150 = vld [vmem:[%s4 + $0x60] sm:$0xff]
    %v1151 = vld [vmem:[%s4 + $0x68] sm:$0xff]
    %v1152 = vld [vmem:[%s4 + $0x70] sm:$0xff]
    %v1153 = vld [vmem:[%s4 + $0x78] sm:$0xff]
    %v1154 = vld [vmem:[%s5] sm:$0x1]
    %v1156 = vlaneseq
    %v1157 = vshrl.u32 %v1156, 7
    %v1158 = vsub.s32 0, %v1157
    %v1159 = vrot.slane %v1154, %v1158
    %1161 = vmatprep.subr.mxu0 0.0
    %1162 = vmatpush1.msra.mxu0 %v1138
    %1163 = vmatprep.subr.mxu0 0.0
    %1164 = vmatpush1.msra.mxu0 %v1139
    %1165 = vmatprep.subr.mxu0 0.0
    %1166 = vmatpush1.msra.mxu0 %v1140
    %1167 = vmatprep.subr.mxu0 0.0
    %1168 = vmatpush1.msra.mxu0 %v1141
    %1169 = vmatprep.subr.mxu0 0.0
    %1170 = vmatpush1.msra.mxu0 %v1142
    %1171 = vmatprep.subr.mxu0 0.0
    %1172 = vmatpush1.msra.mxu0 %v1143
    %1173 = vmatprep.subr.mxu0 0.0
    %1174 = vmatpush1.msra.mxu0 %v1144
    %1175 = vmatprep.subr.mxu0 0.0
    %1176 = vmatpush1.msra.mxu0 %v1145
    %1177 = vmatprep.subr.mxu0 0.0
    %1178 = vmatpush1.msra.mxu0 %v1146
    %1179 = vmatprep.subr.mxu0 0.0
    %1180 = vmatpush1.msra.mxu0 %v1147
    %1181 = vmatprep.subr.mxu0 0.0
    %1182 = vmatpush1.msra.mxu0 %v1148
    %1183 = vmatprep.subr.mxu0 0.0
    %1184 = vmatpush1.msra.mxu0 %v1149
    %1185 = vmatprep.subr.mxu0 0.0
    %1186 = vmatpush1.msra.mxu0 %v1150
    %1187 = vmatprep.subr.mxu0 0.0
    %1188 = vmatpush1.msra.mxu0 %v1151
    %1189 = vmatprep.subr.mxu0 0.0
    %1190 = vmatpush1.msra.mxu0 %v1152
    %1191 = vmatprep.subr.mxu0 0.0
    %1192 = vmatpush1.msra.mxu0 %v1153
    %1193 = vmatprep.subr.mxu0 0.0
    %1194 = vmatpush1.msra.mxu0 0.0
    %1195 = vmatprep.subr.mxu0 0.0
    %1196 = vmatpush1.msra.mxu0 0.0
    %1197 = vmatprep.subr.mxu0 0.0
    %1198 = vmatpush1.msra.mxu0 0.0
    %1199 = vmatprep.subr.mxu0 0.0
    %1200 = vmatpush1.msra.mxu0 0.0
    %1201 = vmatprep.subr.mxu0 0.0
    %1202 = vmatpush1.msra.mxu0 0.0
    %1203 = vmatprep.subr.mxu0 0.0
    %1204 = vmatpush1.msra.mxu0 0.0
    %1205 = vmatprep.subr.mxu0 0.0
    %1206 = vmatpush1.msra.mxu0 0.0
    %1207 = vmatprep.subr.mxu0 0.0
    %1208 = vmatpush1.msra.mxu0 0.0
    %1209 = vmatprep.subr.mxu0 0.0
    %1210 = vmatpush1.msra.mxu0 0.0
    %1211 = vmatprep.subr.mxu0 0.0
    %1212 = vmatpush1.msra.mxu0 0.0
    %1213 = vmatprep.subr.mxu0 0.0
    %1214 = vmatpush1.msra.mxu0 0.0
    %1215 = vmatprep.subr.mxu0 0.0
    %1216 = vmatpush1.msra.mxu0 0.0
    %1217 = vmatprep.subr.mxu0 0.0
    %1218 = vmatpush1.msra.mxu0 0.0
    %1219 = vmatprep.subr.mxu0 0.0
    %1220 = vmatpush1.msra.mxu0 0.0
    %1221 = vmatprep.subr.mxu0 0.0
    %1222 = vmatpush1.msra.mxu0 0.0
    %1223 = vmatprep.subr.mxu0 0.0
    %1224 = vmatpush1.msra.mxu0 0.0
    %1225 = vmatprep.mubr.f32.mxu0 0.0
    %1226 = vmatmul.mubr.f32.gmra.mrb[0].mxu0 %v1130
    %v1227 = vpop.f32.mrb[0].mxu0
    %v1228 = vadd.f32 %v1159, %v1227
    %v1229 = vpop.f32.mrb[0].mxu0
    %1230 = vmatprep.mubr.f32.mxu0 0.0
    %1231 = vmatmul.mubr.f32.gmra.mrb[0].mxu0 %v1131
    %v1232 = vpop.f32.mrb[0].mxu0
    %v1233 = vadd.f32 %v1159, %v1232
    %v1234 = vpop.f32.mrb[0].mxu0
    %1235 = vmatprep.mubr.f32.mxu0 0.0
    %1236 = vmatmul.mubr.f32.gmra.mrb[0].mxu0 %v1132
    %v1237 = vpop.f32.mrb[0].mxu0
    %v1238 = vadd.f32 %v1159, %v1237
    %v1239 = vpop.f32.mrb[0].mxu0
    %1240 = vmatprep.mubr.f32.mxu0 0.0
    %1241 = vmatmul.mubr.f32.gmra.mrb[0].mxu0 %v1133
    %v1242 = vpop.f32.mrb[0].mxu0
    %v1243 = vadd.f32 %v1159, %v1242
    %v1244 = vpop.f32.mrb[0].mxu0
    %1245 = vmatprep.mubr.f32.mxu0 0.0
    %1246 = vmatmul.mubr.f32.gmra.mrb[0].mxu0 %v1134
    %v1247 = vpop.f32.mrb[0].mxu0
    %v1248 = vadd.f32 %v1159, %v1247
    %v1249 = vpop.f32.mrb[0].mxu0
    %1250 = vmatprep.mubr.f32.mxu0 0.0
    %1251 = vmatmul.mubr.f32.gmra.mrb[0].mxu0 %v1135
    %v1252 = vpop.f32.mrb[0].mxu0
    %v1253 = vadd.f32 %v1159, %v1252
    %v1254 = vpop.f32.mrb[0].mxu0
    %1255 = vmatprep.mubr.f32.mxu0 0.0
    %1256 = vmatmul.mubr.f32.gmra.mrb[0].mxu0 %v1136
    %v1257 = vpop.f32.mrb[0].mxu0
    %v1258 = vadd.f32 %v1159, %v1257
    %v1259 = vpop.f32.mrb[0].mxu0
    %1260 = vmatprep.mubr.f32.mxu0 0.0
    %1261 = vmatmul.mubr.f32.gmra.mrb[0].mxu0 %v1137
    %v1262 = vpop.f32.mrb[0].mxu0
    %v1263 = vadd.f32 %v1159, %v1262
    %v1264 = vpop.f32.mrb[0].mxu0
    %1265 = vdwg.mxu0
    %vm1266 = vcmask 31744
    %1267 = vst.msk [vmem:[%s6] sm:$0xff] %vm1266, %v1228
    %1268 = vst.msk [vmem:[%s6 + $0x8] sm:$0xff] %vm1266, %v1233
    %1269 = vst.msk [vmem:[%s6 + $0x10] sm:$0xff] %vm1266, %v1238
    %1270 = vst.msk [vmem:[%s6 + $0x18] sm:$0xff] %vm1266, %v1243
    %1271 = vst.msk [vmem:[%s6 + $0x20] sm:$0xff] %vm1266, %v1248
    %1272 = vst.msk [vmem:[%s6 + $0x28] sm:$0xff] %vm1266, %v1253
    %1273 = vst.msk [vmem:[%s6 + $0x30] sm:$0xff] %vm1266, %v1258
    %1274 = vst.msk [vmem:[%s6 + $0x38] sm:$0xff] %vm1266, %v1263
    // Predicated region
    $region38: #{tpu_custom_call.1} parent=1 // pred_check
      _
    $region39: #{tpu_custom_call.1} parent=1 // pred_check_branch
      %1276 = sbr.rel (0) target = $region41
    $region40: #{tpu_custom_call.1} parent=1 // pred_region
      _
    $region41: #{tpu_custom_call.1} parent=1 // pred_fallthru
      _
    // Predicated region
    $region42: #{tpu_custom_call.1} parent=1 // pred_check
      _
    $region43: #{tpu_custom_call.1} parent=1 // pred_check_branch
      %1278 = sbr.rel (0) target = $region45
    $region44: #{tpu_custom_call.1} parent=1 // pred_region
      _
    $region45: #{tpu_custom_call.1} parent=1 // pred_fallthru
      _
    %1279 = vsyncpa [#allocation3], 1
    %1280 = vsyncpa [#allocation5], 1

</llo_original>
